<compile_context>
chip_gen: v5e
topology: v5e:2x2
jax: 0.10.0
libtpu: 0.0.40
codegen_flags: <defaults>
</compile_context>

<pallas_src>
import math

import jax
import jax.numpy as jnp
from jax import lax
from jax.experimental import pallas as pl
from jax.experimental.pallas import tpu as pltpu

# ---------------- model configuration (small, synthetic "mlm") --------------
B = 2                    # batch
S = 8                    # max_sent_len
H = 32                   # hidden_size (mlm_out_size)
NUM_HEADS = 4
HEAD_DIM = H // NUM_HEADS
INTER = 64               # FFN intermediate size
VOCAB = 100
NLABELS = 3
NLABELS_PAD = 128        # lane-dense padded label dim (sliced in wrapper)
NUM_LAYERS = 2
LN_EPS = 1e-12

N = B * S                # flattened token count


# ---------------------------- kernel helpers --------------------------------
def _layer_norm(x, gamma, beta):
    mu = jnp.mean(x, axis=-1, keepdims=True)
    var = jnp.mean((x - mu) ** 2, axis=-1, keepdims=True)
    return (x - mu) * lax.rsqrt(var + LN_EPS) * gamma + beta


def _softmax_last(s):
    s = s - jnp.max(s, axis=-1, keepdims=True)
    p = jnp.exp(s)
    return p * pl.reciprocal(jnp.sum(p, axis=-1, keepdims=True), approx=True)


# ------------------------------ fused Pallas kernel --------------------------
def fused_forward_kernel(
        emb_ref, mask_ref, embg_ref, embb_ref,
        wqkv_ref, bqkv_ref, wo_ref, bo_ref, ln1g_ref, ln1b_ref,
        w1_ref, b1_ref, w2_ref, b2_ref, ln2g_ref, ln2b_ref,
        wc_ref, bc_ref, out_ref):
    # ---- embedding LayerNorm on the pre-flattened (N, H) token block ----
    hid = _layer_norm(emb_ref[...], embg_ref[...], embb_ref[...])

    # combined additive mask (N, N): padding keys AND cross-batch pairs = -10000
    mask = mask_ref[...]

    # ---- encoder layers, fully unrolled (static layer indices) ----
    for l in range(NUM_LAYERS):
        xb = hid.astype(jnp.bfloat16)

        # fused QKV: one (N, H) @ (H, 3H) MXU matmul; 1/sqrt(HD) folded into Q weights
        qkv = jnp.dot(xb, wqkv_ref[l],
                      preferred_element_type=jnp.float32) + bqkv_ref[l]   # (N, 3H)

        # per-head attention on flattened tokens; cross-batch pairs are masked out,
        # so the (N, N) softmax is exactly the per-batch softmax of the reference.
        ctx_heads = []
        for h in range(NUM_HEADS):
            qh = qkv[:, h * HEAD_DIM:(h + 1) * HEAD_DIM].astype(jnp.bfloat16)
            kh = qkv[:, H + h * HEAD_DIM: H + (h + 1) * HEAD_DIM].astype(jnp.bfloat16)
            vh = qkv[:, 2 * H + h * HEAD_DIM: 2 * H + (h + 1) * HEAD_DIM].astype(jnp.bfloat16)
            s = jnp.einsum("qd,kd->qk", qh, kh,
                           preferred_element_type=jnp.float32) + mask      # (N, N)
            p = _softmax_last(s).astype(jnp.bfloat16)
            ctx_heads.append(jnp.dot(p, vh,
                                     preferred_element_type=jnp.float32))  # (N, HD)

        # single lane-dense output projection: (N, H) @ (H, H)
        ctx = jnp.concatenate(ctx_heads, axis=-1).astype(jnp.bfloat16)      # (N, H)
        attn = jnp.dot(ctx, wo_ref[l],
                       preferred_element_type=jnp.float32) + bo_ref[l]

        h1 = _layer_norm(hid + attn, ln1g_ref[l], ln1b_ref[l])

        # FFN: two plain 2-D MXU matmuls on the flattened token block
        f = jnp.dot(h1.astype(jnp.bfloat16), w1_ref[l],
                    preferred_element_type=jnp.float32) + b1_ref[l]
        f = jax.nn.gelu(f, approximate=True)
        f = jnp.dot(f.astype(jnp.bfloat16), w2_ref[l],
                    preferred_element_type=jnp.float32) + b2_ref[l]
        hid = _layer_norm(h1 + f, ln2g_ref[l], ln2b_ref[l])

    # ---- fused CLS head: static row slices (rows b*S), lane-padded logits ----
    cls = jnp.concatenate([hid[b * S:b * S + 1, :] for b in range(B)], axis=0)  # (B, H)
    out_ref[...] = jnp.dot(cls, wc_ref[...],
                           preferred_element_type=jnp.float32) + bc_ref[...]


# ------------------------------ forward wrapper ------------------------------
@jax.jit
def class_model_forward(input_ids, attention_mask, p):
    """Equivalent of ClassModel.forward (synthetic BERT-style mlm)."""
    assert input_ids.shape == (B, S)

    # embeddings (table gather is glue, done in plain JAX), pre-flattened to (N, H)
    emb = (p["word_emb"][input_ids]
           + p["pos_emb"][None, :S, :]
           + p["type_emb"][0][None, None, :]).astype(jnp.float32).reshape(N, H)

    # combined additive mask over flattened tokens: HF-style -10000 for padded keys,
    # -10000 for cross-batch (query, key) pairs so batches stay independent.
    pad = ((1.0 - attention_mask.astype(jnp.float32)) * -10000.0).reshape(N)  # per key
    same_batch = ((jnp.arange(N)[:, None] // S) == (jnp.arange(N)[None, :] // S))
    mask_nn = jnp.where(same_batch, jnp.broadcast_to(pad[None, :], (N, N)),
                        jnp.float32(-10000.0))

    vmem = pl.BlockSpec(memory_space=pltpu.MemorySpace.VMEM)
    operands = (emb, mask_nn, p["emb_ln_g"], p["emb_ln_b"],
                p["wqkv"], p["bqkv"], p["wo"], p["bo"], p["ln1_g"], p["ln1_b"],
                p["w1"], p["b1"], p["w2"], p["b2"], p["ln2_g"], p["ln2_b"],
                p["cls_w"], p["cls_b"])
    logits_padded = pl.pallas_call(
        fused_forward_kernel,
        out_shape=jax.ShapeDtypeStruct((B, NLABELS_PAD), jnp.float32),
        in_specs=[vmem] * len(operands),
        out_specs=vmem,
    )(*operands)
    return logits_padded[:, :NLABELS]


# ------------------------------ parameter init -------------------------------
def init_params(key):
    std = 0.02

    def nrm(k, shape):
        return jax.random.normal(k, shape, jnp.float32) * std

    keys = jax.random.split(key, 4 + NUM_LAYERS)
    params = {
        "word_emb": nrm(keys[0], (VOCAB, H)),
        "pos_emb": nrm(keys[1], (S, H)),
        "type_emb": nrm(keys[2], (2, H)),
        "emb_ln_g": jnp.ones((1, H), jnp.float32),
        "emb_ln_b": jnp.zeros((1, H), jnp.float32),
        "cls_w": nrm(keys[3], (H, NLABELS)),
        "cls_b": jnp.zeros((1, NLABELS), jnp.float32),
        "layers": [],
    }
    for li in range(NUM_LAYERS):
        lk = jax.random.split(keys[4 + li], 6)
        params["layers"].append({
            "wq": nrm(lk[0], (H, H)), "bq": jnp.zeros((1, H), jnp.float32),
            "wk": nrm(lk[1], (H, H)), "bk": jnp.zeros((1, H), jnp.float32),
            "wv": nrm(lk[2], (H, H)), "bv": jnp.zeros((1, H), jnp.float32),
            "wo": nrm(lk[3], (H, H)), "bo": jnp.zeros((1, H), jnp.float32),
            "ln1_g": jnp.ones((1, H), jnp.float32),
            "ln1_b": jnp.zeros((1, H), jnp.float32),
            "w1": nrm(lk[4], (H, INTER)), "b1": jnp.zeros((1, INTER), jnp.float32),
            "w2": nrm(lk[5], (INTER, H)), "b2": jnp.zeros((1, H), jnp.float32),
            "ln2_g": jnp.ones((1, H), jnp.float32),
            "ln2_b": jnp.zeros((1, H), jnp.float32),
        })
    return params


def pack_params(params):
    """Host-side one-time packing:
    * Q/K/V fused into wqkv (L, H, 3H) bf16, attention scale folded into Q weights/bias.
    * Per-layer weights stacked on a leading layer axis; matmul weights bf16.
    * CLS head lane-padded to 128 columns for an unmasked lane-dense store."""
    layers = params["layers"]
    bf16 = jnp.bfloat16
    scale = 1.0 / math.sqrt(HEAD_DIM)

    def stack(fn):
        return jnp.stack([fn(lp) for lp in layers], axis=0)

    cls_w = jnp.zeros((H, NLABELS_PAD), jnp.float32).at[:, :NLABELS].set(params["cls_w"])
    cls_b = jnp.zeros((1, NLABELS_PAD), jnp.float32).at[:, :NLABELS].set(params["cls_b"])

    return dict(
        word_emb=params["word_emb"], pos_emb=params["pos_emb"],
        type_emb=params["type_emb"],
        emb_ln_g=params["emb_ln_g"], emb_ln_b=params["emb_ln_b"],
        cls_w=cls_w, cls_b=cls_b,
        wqkv=stack(lambda lp: jnp.concatenate(
            [lp["wq"] * scale, lp["wk"], lp["wv"]], axis=1)).astype(bf16),   # (L, H, 3H)
        bqkv=stack(lambda lp: jnp.concatenate(
            [lp["bq"] * scale, lp["bk"], lp["bv"]], axis=1)),                # (L, 1, 3H)
        wo=stack(lambda lp: lp["wo"]).astype(bf16),                          # (L, H, H)
        bo=stack(lambda lp: lp["bo"]),
        ln1_g=stack(lambda lp: lp["ln1_g"]), ln1_b=stack(lambda lp: lp["ln1_b"]),
        w1=stack(lambda lp: lp["w1"]).astype(bf16),
        b1=stack(lambda lp: lp["b1"]),
        w2=stack(lambda lp: lp["w2"]).astype(bf16),
        b2=stack(lambda lp: lp["b2"]),
        ln2_g=stack(lambda lp: lp["ln2_g"]), ln2_b=stack(lambda lp: lp["ln2_b"]),
    )


# ------------------------------------ main ------------------------------------
if __name__ == "__main__":
    key = jax.random.PRNGKey(0)
    pkey, ikey = jax.random.split(key)
    packed = pack_params(init_params(pkey))

    input_ids = jax.random.randint(ikey, (B, S), 0, VOCAB, dtype=jnp.int32)
    attention_mask = jnp.ones((B, S), jnp.float32).at[1, 6:].set(0.0)

    logits = class_model_forward(input_ids, attention_mask, packed)
    jax.block_until_ready(logits)

    assert logits.shape == (B, NLABELS), logits.shape
    assert bool(jnp.all(jnp.isfinite(logits)))
    print("KERNEL_OK")
</pallas_src>

<mosaic_0001>
module attributes {stable_mosaic.version = 11 : i64} {
  func.func @fused_forward_kernel(%arg0: memref<16x32xf32, #tpu.memory_space<vmem>>, %arg1: memref<16x16xf32, #tpu.memory_space<vmem>>, %arg2: memref<1x32xf32, #tpu.memory_space<vmem>>, %arg3: memref<1x32xf32, #tpu.memory_space<vmem>>, %arg4: memref<2x32x96xbf16, #tpu.memory_space<vmem>>, %arg5: memref<2x1x96xf32, #tpu.memory_space<vmem>>, %arg6: memref<2x32x32xbf16, #tpu.memory_space<vmem>>, %arg7: memref<2x1x32xf32, #tpu.memory_space<vmem>>, %arg8: memref<2x1x32xf32, #tpu.memory_space<vmem>>, %arg9: memref<2x1x32xf32, #tpu.memory_space<vmem>>, %arg10: memref<2x32x64xbf16, #tpu.memory_space<vmem>>, %arg11: memref<2x1x64xf32, #tpu.memory_space<vmem>>, %arg12: memref<2x64x32xbf16, #tpu.memory_space<vmem>>, %arg13: memref<2x1x32xf32, #tpu.memory_space<vmem>>, %arg14: memref<2x1x32xf32, #tpu.memory_space<vmem>>, %arg15: memref<2x1x32xf32, #tpu.memory_space<vmem>>, %arg16: memref<32x128xf32, #tpu.memory_space<vmem>>, %arg17: memref<1x128xf32, #tpu.memory_space<vmem>>, %arg18: memref<2x128xf32, #tpu.memory_space<vmem>>) attributes {dimension_semantics = [], scalar_prefetch = 0 : i64, scratch_operands = 0 : i64, tpu.core_type = #tpu.core_type<tc>} {
    %c0 = arith.constant 0 : index
    %c0_0 = arith.constant 0 : index
    %0 = vector.load %arg0[%c0, %c0_0] : memref<16x32xf32, #tpu.memory_space<vmem>>, vector<16x32xf32>
    %c0_1 = arith.constant 0 : index
    %c0_2 = arith.constant 0 : index
    %1 = vector.load %arg2[%c0_1, %c0_2] : memref<1x32xf32, #tpu.memory_space<vmem>>, vector<1x32xf32>
    %c0_3 = arith.constant 0 : index
    %c0_4 = arith.constant 0 : index
    %2 = vector.load %arg3[%c0_3, %c0_4] : memref<1x32xf32, #tpu.memory_space<vmem>>, vector<1x32xf32>
    %cst = arith.constant dense<0.000000e+00> : vector<16xf32>
    %3 = vector.multi_reduction <add>, %0, %cst [1] : vector<16x32xf32> to vector<16xf32>
    %4 = vector.shape_cast %3 : vector<16xf32> to vector<16x1xf32>
    %cst_5 = arith.constant 3.200000e+01 : f32
    %5 = vector.broadcast %cst_5 : f32 to vector<16x1xf32>
    %6 = arith.divf %4, %5 : vector<16x1xf32>
    %7 = vector.broadcast %6 : vector<16x1xf32> to vector<16x32xf32>
    %8 = arith.subf %0, %7 : vector<16x32xf32>
    %9 = arith.mulf %8, %8 : vector<16x32xf32>
    %cst_6 = arith.constant dense<0.000000e+00> : vector<16xf32>
    %10 = vector.multi_reduction <add>, %9, %cst_6 [1] : vector<16x32xf32> to vector<16xf32>
    %11 = vector.shape_cast %10 : vector<16xf32> to vector<16x1xf32>
    %cst_7 = arith.constant 3.200000e+01 : f32
    %12 = vector.broadcast %cst_7 : f32 to vector<16x1xf32>
    %13 = arith.divf %11, %12 : vector<16x1xf32>
    %14 = vector.broadcast %6 : vector<16x1xf32> to vector<16x32xf32>
    %15 = arith.subf %0, %14 : vector<16x32xf32>
    %cst_8 = arith.constant 9.99999996E-13 : f32
    %16 = vector.broadcast %cst_8 : f32 to vector<16x1xf32>
    %17 = arith.addf %13, %16 : vector<16x1xf32>
    %18 = math.rsqrt %17 : vector<16x1xf32>
    %19 = vector.broadcast %18 : vector<16x1xf32> to vector<16x32xf32>
    %20 = arith.mulf %15, %19 : vector<16x32xf32>
    %21 = vector.broadcast %1 : vector<1x32xf32> to vector<16x32xf32>
    %22 = arith.mulf %20, %21 : vector<16x32xf32>
    %23 = vector.broadcast %2 : vector<1x32xf32> to vector<16x32xf32>
    %24 = arith.addf %22, %23 : vector<16x32xf32>
    %c0_9 = arith.constant 0 : index
    %c0_10 = arith.constant 0 : index
    %25 = vector.load %arg1[%c0_9, %c0_10] : memref<16x16xf32, #tpu.memory_space<vmem>>, vector<16x16xf32>
    %26 = arith.truncf %24 : vector<16x32xf32> to vector<16x32xbf16>
    %c0_11 = arith.constant 0 : index
    %c0_12 = arith.constant 0 : index
    %c0_13 = arith.constant 0 : index
    %27 = vector.load %arg4[%c0_11, %c0_12, %c0_13] : memref<2x32x96xbf16, #tpu.memory_space<vmem>>, vector<1x32x96xbf16>
    %28 = vector.shape_cast %27 : vector<1x32x96xbf16> to vector<32x96xbf16>
    %cst_14 = arith.constant dense<0.000000e+00> : vector<16x96xf32>
    %29 = tpu.matmul %26, %28, %cst_14 {dimension_numbers = #tpu.dot_dimension_numbers<[1], [0], [0], [1], [0, 0, 1, 1], [], []>} : vector<16x32xbf16>, vector<32x96xbf16>, vector<16x96xf32> -> vector<16x96xf32>
    %c0_15 = arith.constant 0 : index
    %c0_16 = arith.constant 0 : index
    %c0_17 = arith.constant 0 : index
    %30 = vector.load %arg5[%c0_15, %c0_16, %c0_17] : memref<2x1x96xf32, #tpu.memory_space<vmem>>, vector<1x1x96xf32>
    %31 = vector.shape_cast %30 : vector<1x1x96xf32> to vector<1x96xf32>
    %32 = vector.broadcast %31 : vector<1x96xf32> to vector<16x96xf32>
    %33 = arith.addf %29, %32 : vector<16x96xf32>
    %34 = vector.extract_strided_slice %33 {offsets = [0, 0], sizes = [16, 8], strides = [1, 1]} : vector<16x96xf32> to vector<16x8xf32>
    %35 = arith.truncf %34 : vector<16x8xf32> to vector<16x8xbf16>
    %36 = vector.extract_strided_slice %33 {offsets = [0, 32], sizes = [16, 8], strides = [1, 1]} : vector<16x96xf32> to vector<16x8xf32>
    %37 = arith.truncf %36 : vector<16x8xf32> to vector<16x8xbf16>
    %38 = vector.extract_strided_slice %33 {offsets = [0, 64], sizes = [16, 8], strides = [1, 1]} : vector<16x96xf32> to vector<16x8xf32>
    %39 = arith.truncf %38 : vector<16x8xf32> to vector<16x8xbf16>
    "tpu.trace_start"() <{level = 10 : i32, message = "qd,kd->qk"}> : () -> ()
    %cst_18 = arith.constant dense<0.000000e+00> : vector<16x16xf32>
    %40 = tpu.matmul %35, %37, %cst_18 {dimension_numbers = #tpu.dot_dimension_numbers<[1], [1], [0], [0], [0, 0, 1, 0], [], []>} : vector<16x8xbf16>, vector<16x8xbf16>, vector<16x16xf32> -> vector<16x16xf32>
    "tpu.trace_stop"() : () -> ()
    %41 = arith.addf %40, %25 : vector<16x16xf32>
    %cst_19 = arith.constant dense<0xFF800000> : vector<16xf32>
    %42 = vector.multi_reduction <maximumf>, %41, %cst_19 [1] : vector<16x16xf32> to vector<16xf32>
    %43 = vector.shape_cast %42 : vector<16xf32> to vector<16x1xf32>
    %44 = vector.broadcast %43 : vector<16x1xf32> to vector<16x16xf32>
    %45 = arith.subf %41, %44 : vector<16x16xf32>
    %46 = math.exp %45 : vector<16x16xf32>
    %cst_20 = arith.constant dense<0.000000e+00> : vector<16xf32>
    %47 = vector.multi_reduction <add>, %46, %cst_20 [1] : vector<16x16xf32> to vector<16xf32>
    %48 = vector.shape_cast %47 : vector<16xf32> to vector<16x1xf32>
    %49 = tpu.reciprocal %48 {approx = true} : vector<16x1xf32> -> vector<16x1xf32>
    %50 = vector.broadcast %49 : vector<16x1xf32> to vector<16x16xf32>
    %51 = arith.mulf %46, %50 : vector<16x16xf32>
    %52 = arith.truncf %51 : vector<16x16xf32> to vector<16x16xbf16>
    %cst_21 = arith.constant dense<0.000000e+00> : vector<16x8xf32>
    %53 = tpu.matmul %52, %39, %cst_21 {dimension_numbers = #tpu.dot_dimension_numbers<[1], [0], [0], [1], [0, 0, 1, 1], [], []>} : vector<16x16xbf16>, vector<16x8xbf16>, vector<16x8xf32> -> vector<16x8xf32>
    %54 = vector.extract_strided_slice %33 {offsets = [0, 8], sizes = [16, 8], strides = [1, 1]} : vector<16x96xf32> to vector<16x8xf32>
    %55 = arith.truncf %54 : vector<16x8xf32> to vector<16x8xbf16>
    %56 = vector.extract_strided_slice %33 {offsets = [0, 40], sizes = [16, 8], strides = [1, 1]} : vector<16x96xf32> to vector<16x8xf32>
    %57 = arith.truncf %56 : vector<16x8xf32> to vector<16x8xbf16>
    %58 = vector.extract_strided_slice %33 {offsets = [0, 72], sizes = [16, 8], strides = [1, 1]} : vector<16x96xf32> to vector<16x8xf32>
    %59 = arith.truncf %58 : vector<16x8xf32> to vector<16x8xbf16>
    "tpu.trace_start"() <{level = 10 : i32, message = "qd,kd->qk"}> : () -> ()
    %cst_22 = arith.constant dense<0.000000e+00> : vector<16x16xf32>
    %60 = tpu.matmul %55, %57, %cst_22 {dimension_numbers = #tpu.dot_dimension_numbers<[1], [1], [0], [0], [0, 0, 1, 0], [], []>} : vector<16x8xbf16>, vector<16x8xbf16>, vector<16x16xf32> -> vector<16x16xf32>
    "tpu.trace_stop"() : () -> ()
    %61 = arith.addf %60, %25 : vector<16x16xf32>
    %cst_23 = arith.constant dense<0xFF800000> : vector<16xf32>
    %62 = vector.multi_reduction <maximumf>, %61, %cst_23 [1] : vector<16x16xf32> to vector<16xf32>
    %63 = vector.shape_cast %62 : vector<16xf32> to vector<16x1xf32>
    %64 = vector.broadcast %63 : vector<16x1xf32> to vector<16x16xf32>
    %65 = arith.subf %61, %64 : vector<16x16xf32>
    %66 = math.exp %65 : vector<16x16xf32>
    %cst_24 = arith.constant dense<0.000000e+00> : vector<16xf32>
    %67 = vector.multi_reduction <add>, %66, %cst_24 [1] : vector<16x16xf32> to vector<16xf32>
    %68 = vector.shape_cast %67 : vector<16xf32> to vector<16x1xf32>
    %69 = tpu.reciprocal %68 {approx = true} : vector<16x1xf32> -> vector<16x1xf32>
    %70 = vector.broadcast %69 : vector<16x1xf32> to vector<16x16xf32>
    %71 = arith.mulf %66, %70 : vector<16x16xf32>
    %72 = arith.truncf %71 : vector<16x16xf32> to vector<16x16xbf16>
    %cst_25 = arith.constant dense<0.000000e+00> : vector<16x8xf32>
    %73 = tpu.matmul %72, %59, %cst_25 {dimension_numbers = #tpu.dot_dimension_numbers<[1], [0], [0], [1], [0, 0, 1, 1], [], []>} : vector<16x16xbf16>, vector<16x8xbf16>, vector<16x8xf32> -> vector<16x8xf32>
    %74 = vector.extract_strided_slice %33 {offsets = [0, 16], sizes = [16, 8], strides = [1, 1]} : vector<16x96xf32> to vector<16x8xf32>
    %75 = arith.truncf %74 : vector<16x8xf32> to vector<16x8xbf16>
    %76 = vector.extract_strided_slice %33 {offsets = [0, 48], sizes = [16, 8], strides = [1, 1]} : vector<16x96xf32> to vector<16x8xf32>
    %77 = arith.truncf %76 : vector<16x8xf32> to vector<16x8xbf16>
    %78 = vector.extract_strided_slice %33 {offsets = [0, 80], sizes = [16, 8], strides = [1, 1]} : vector<16x96xf32> to vector<16x8xf32>
    %79 = arith.truncf %78 : vector<16x8xf32> to vector<16x8xbf16>
    "tpu.trace_start"() <{level = 10 : i32, message = "qd,kd->qk"}> : () -> ()
    %cst_26 = arith.constant dense<0.000000e+00> : vector<16x16xf32>
    %80 = tpu.matmul %75, %77, %cst_26 {dimension_numbers = #tpu.dot_dimension_numbers<[1], [1], [0], [0], [0, 0, 1, 0], [], []>} : vector<16x8xbf16>, vector<16x8xbf16>, vector<16x16xf32> -> vector<16x16xf32>
    "tpu.trace_stop"() : () -> ()
    %81 = arith.addf %80, %25 : vector<16x16xf32>
    %cst_27 = arith.constant dense<0xFF800000> : vector<16xf32>
    %82 = vector.multi_reduction <maximumf>, %81, %cst_27 [1] : vector<16x16xf32> to vector<16xf32>
    %83 = vector.shape_cast %82 : vector<16xf32> to vector<16x1xf32>
    %84 = vector.broadcast %83 : vector<16x1xf32> to vector<16x16xf32>
    %85 = arith.subf %81, %84 : vector<16x16xf32>
    %86 = math.exp %85 : vector<16x16xf32>
    %cst_28 = arith.constant dense<0.000000e+00> : vector<16xf32>
    %87 = vector.multi_reduction <add>, %86, %cst_28 [1] : vector<16x16xf32> to vector<16xf32>
    %88 = vector.shape_cast %87 : vector<16xf32> to vector<16x1xf32>
    %89 = tpu.reciprocal %88 {approx = true} : vector<16x1xf32> -> vector<16x1xf32>
    %90 = vector.broadcast %89 : vector<16x1xf32> to vector<16x16xf32>
    %91 = arith.mulf %86, %90 : vector<16x16xf32>
    %92 = arith.truncf %91 : vector<16x16xf32> to vector<16x16xbf16>
    %cst_29 = arith.constant dense<0.000000e+00> : vector<16x8xf32>
    %93 = tpu.matmul %92, %79, %cst_29 {dimension_numbers = #tpu.dot_dimension_numbers<[1], [0], [0], [1], [0, 0, 1, 1], [], []>} : vector<16x16xbf16>, vector<16x8xbf16>, vector<16x8xf32> -> vector<16x8xf32>
    %94 = vector.extract_strided_slice %33 {offsets = [0, 24], sizes = [16, 8], strides = [1, 1]} : vector<16x96xf32> to vector<16x8xf32>
    %95 = arith.truncf %94 : vector<16x8xf32> to vector<16x8xbf16>
    %96 = vector.extract_strided_slice %33 {offsets = [0, 56], sizes = [16, 8], strides = [1, 1]} : vector<16x96xf32> to vector<16x8xf32>
    %97 = arith.truncf %96 : vector<16x8xf32> to vector<16x8xbf16>
    %98 = vector.extract_strided_slice %33 {offsets = [0, 88], sizes = [16, 8], strides = [1, 1]} : vector<16x96xf32> to vector<16x8xf32>
    %99 = arith.truncf %98 : vector<16x8xf32> to vector<16x8xbf16>
    "tpu.trace_start"() <{level = 10 : i32, message = "qd,kd->qk"}> : () -> ()
    %cst_30 = arith.constant dense<0.000000e+00> : vector<16x16xf32>
    %100 = tpu.matmul %95, %97, %cst_30 {dimension_numbers = #tpu.dot_dimension_numbers<[1], [1], [0], [0], [0, 0, 1, 0], [], []>} : vector<16x8xbf16>, vector<16x8xbf16>, vector<16x16xf32> -> vector<16x16xf32>
    "tpu.trace_stop"() : () -> ()
    %101 = arith.addf %100, %25 : vector<16x16xf32>
    %cst_31 = arith.constant dense<0xFF800000> : vector<16xf32>
    %102 = vector.multi_reduction <maximumf>, %101, %cst_31 [1] : vector<16x16xf32> to vector<16xf32>
    %103 = vector.shape_cast %102 : vector<16xf32> to vector<16x1xf32>
    %104 = vector.broadcast %103 : vector<16x1xf32> to vector<16x16xf32>
    %105 = arith.subf %101, %104 : vector<16x16xf32>
    %106 = math.exp %105 : vector<16x16xf32>
    %cst_32 = arith.constant dense<0.000000e+00> : vector<16xf32>
    %107 = vector.multi_reduction <add>, %106, %cst_32 [1] : vector<16x16xf32> to vector<16xf32>
    %108 = vector.shape_cast %107 : vector<16xf32> to vector<16x1xf32>
    %109 = tpu.reciprocal %108 {approx = true} : vector<16x1xf32> -> vector<16x1xf32>
    %110 = vector.broadcast %109 : vector<16x1xf32> to vector<16x16xf32>
    %111 = arith.mulf %106, %110 : vector<16x16xf32>
    %112 = arith.truncf %111 : vector<16x16xf32> to vector<16x16xbf16>
    %cst_33 = arith.constant dense<0.000000e+00> : vector<16x8xf32>
    %113 = tpu.matmul %112, %99, %cst_33 {dimension_numbers = #tpu.dot_dimension_numbers<[1], [0], [0], [1], [0, 0, 1, 1], [], []>} : vector<16x16xbf16>, vector<16x8xbf16>, vector<16x8xf32> -> vector<16x8xf32>
    %114 = tpu.concatenate %53, %73, %93, %113 in 1 : vector<16x8xf32>, vector<16x8xf32>, vector<16x8xf32>, vector<16x8xf32> -> vector<16x32xf32>
    %115 = arith.truncf %114 : vector<16x32xf32> to vector<16x32xbf16>
    %c0_34 = arith.constant 0 : index
    %c0_35 = arith.constant 0 : index
    %c0_36 = arith.constant 0 : index
    %116 = vector.load %arg6[%c0_34, %c0_35, %c0_36] : memref<2x32x32xbf16, #tpu.memory_space<vmem>>, vector<1x32x32xbf16>
    %117 = vector.shape_cast %116 : vector<1x32x32xbf16> to vector<32x32xbf16>
    %cst_37 = arith.constant dense<0.000000e+00> : vector<16x32xf32>
    %118 = tpu.matmul %115, %117, %cst_37 {dimension_numbers = #tpu.dot_dimension_numbers<[1], [0], [0], [1], [0, 0, 1, 1], [], []>} : vector<16x32xbf16>, vector<32x32xbf16>, vector<16x32xf32> -> vector<16x32xf32>
    %c0_38 = arith.constant 0 : index
    %c0_39 = arith.constant 0 : index
    %c0_40 = arith.constant 0 : index
    %119 = vector.load %arg7[%c0_38, %c0_39, %c0_40] : memref<2x1x32xf32, #tpu.memory_space<vmem>>, vector<1x1x32xf32>
    %120 = vector.shape_cast %119 : vector<1x1x32xf32> to vector<1x32xf32>
    %121 = vector.broadcast %120 : vector<1x32xf32> to vector<16x32xf32>
    %122 = arith.addf %118, %121 : vector<16x32xf32>
    %123 = arith.addf %24, %122 : vector<16x32xf32>
    %c0_41 = arith.constant 0 : index
    %c0_42 = arith.constant 0 : index
    %c0_43 = arith.constant 0 : index
    %124 = vector.load %arg8[%c0_41, %c0_42, %c0_43] : memref<2x1x32xf32, #tpu.memory_space<vmem>>, vector<1x1x32xf32>
    %125 = vector.shape_cast %124 : vector<1x1x32xf32> to vector<1x32xf32>
    %c0_44 = arith.constant 0 : index
    %c0_45 = arith.constant 0 : index
    %c0_46 = arith.constant 0 : index
    %126 = vector.load %arg9[%c0_44, %c0_45, %c0_46] : memref<2x1x32xf32, #tpu.memory_space<vmem>>, vector<1x1x32xf32>
    %127 = vector.shape_cast %126 : vector<1x1x32xf32> to vector<1x32xf32>
    %cst_47 = arith.constant dense<0.000000e+00> : vector<16xf32>
    %128 = vector.multi_reduction <add>, %123, %cst_47 [1] : vector<16x32xf32> to vector<16xf32>
    %129 = vector.shape_cast %128 : vector<16xf32> to vector<16x1xf32>
    %cst_48 = arith.constant 3.200000e+01 : f32
    %130 = vector.broadcast %cst_48 : f32 to vector<16x1xf32>
    %131 = arith.divf %129, %130 : vector<16x1xf32>
    %132 = vector.broadcast %131 : vector<16x1xf32> to vector<16x32xf32>
    %133 = arith.subf %123, %132 : vector<16x32xf32>
    %134 = arith.mulf %133, %133 : vector<16x32xf32>
    %cst_49 = arith.constant dense<0.000000e+00> : vector<16xf32>
    %135 = vector.multi_reduction <add>, %134, %cst_49 [1] : vector<16x32xf32> to vector<16xf32>
    %136 = vector.shape_cast %135 : vector<16xf32> to vector<16x1xf32>
    %cst_50 = arith.constant 3.200000e+01 : f32
    %137 = vector.broadcast %cst_50 : f32 to vector<16x1xf32>
    %138 = arith.divf %136, %137 : vector<16x1xf32>
    %139 = vector.broadcast %131 : vector<16x1xf32> to vector<16x32xf32>
    %140 = arith.subf %123, %139 : vector<16x32xf32>
    %cst_51 = arith.constant 9.99999996E-13 : f32
    %141 = vector.broadcast %cst_51 : f32 to vector<16x1xf32>
    %142 = arith.addf %138, %141 : vector<16x1xf32>
    %143 = math.rsqrt %142 : vector<16x1xf32>
    %144 = vector.broadcast %143 : vector<16x1xf32> to vector<16x32xf32>
    %145 = arith.mulf %140, %144 : vector<16x32xf32>
    %146 = vector.broadcast %125 : vector<1x32xf32> to vector<16x32xf32>
    %147 = arith.mulf %145, %146 : vector<16x32xf32>
    %148 = vector.broadcast %127 : vector<1x32xf32> to vector<16x32xf32>
    %149 = arith.addf %147, %148 : vector<16x32xf32>
    %150 = arith.truncf %149 : vector<16x32xf32> to vector<16x32xbf16>
    %c0_52 = arith.constant 0 : index
    %c0_53 = arith.constant 0 : index
    %c0_54 = arith.constant 0 : index
    %151 = vector.load %arg10[%c0_52, %c0_53, %c0_54] : memref<2x32x64xbf16, #tpu.memory_space<vmem>>, vector<1x32x64xbf16>
    %152 = vector.shape_cast %151 : vector<1x32x64xbf16> to vector<32x64xbf16>
    %cst_55 = arith.constant dense<0.000000e+00> : vector<16x64xf32>
    %153 = tpu.matmul %150, %152, %cst_55 {dimension_numbers = #tpu.dot_dimension_numbers<[1], [0], [0], [1], [0, 0, 1, 1], [], []>} : vector<16x32xbf16>, vector<32x64xbf16>, vector<16x64xf32> -> vector<16x64xf32>
    %c0_56 = arith.constant 0 : index
    %c0_57 = arith.constant 0 : index
    %c0_58 = arith.constant 0 : index
    %154 = vector.load %arg11[%c0_56, %c0_57, %c0_58] : memref<2x1x64xf32, #tpu.memory_space<vmem>>, vector<1x1x64xf32>
    %155 = vector.shape_cast %154 : vector<1x1x64xf32> to vector<1x64xf32>
    %156 = vector.broadcast %155 : vector<1x64xf32> to vector<16x64xf32>
    %157 = arith.addf %153, %156 : vector<16x64xf32>
    %158 = arith.mulf %157, %157 : vector<16x64xf32>
    %159 = arith.mulf %157, %158 : vector<16x64xf32>
    %cst_59 = arith.constant 4.471500e-02 : f32
    %160 = vector.broadcast %cst_59 : f32 to vector<16x64xf32>
    %161 = arith.mulf %160, %159 : vector<16x64xf32>
    %162 = arith.addf %157, %161 : vector<16x64xf32>
    %cst_60 = arith.constant 0.797884583 : f32
    %163 = vector.broadcast %cst_60 : f32 to vector<16x64xf32>
    %164 = arith.mulf %163, %162 : vector<16x64xf32>
    %165 = math.tanh %164 : vector<16x64xf32>
    %cst_61 = arith.constant 1.000000e+00 : f32
    %166 = vector.broadcast %cst_61 : f32 to vector<16x64xf32>
    %167 = arith.addf %166, %165 : vector<16x64xf32>
    %cst_62 = arith.constant 5.000000e-01 : f32
    %168 = vector.broadcast %cst_62 : f32 to vector<16x64xf32>
    %169 = arith.mulf %168, %167 : vector<16x64xf32>
    %170 = arith.mulf %157, %169 : vector<16x64xf32>
    %171 = arith.truncf %170 : vector<16x64xf32> to vector<16x64xbf16>
    %c0_63 = arith.constant 0 : index
    %c0_64 = arith.constant 0 : index
    %c0_65 = arith.constant 0 : index
    %172 = vector.load %arg12[%c0_63, %c0_64, %c0_65] : memref<2x64x32xbf16, #tpu.memory_space<vmem>>, vector<1x64x32xbf16>
    %173 = vector.shape_cast %172 : vector<1x64x32xbf16> to vector<64x32xbf16>
    %cst_66 = arith.constant dense<0.000000e+00> : vector<16x32xf32>
    %174 = tpu.matmul %171, %173, %cst_66 {dimension_numbers = #tpu.dot_dimension_numbers<[1], [0], [0], [1], [0, 0, 1, 1], [], []>} : vector<16x64xbf16>, vector<64x32xbf16>, vector<16x32xf32> -> vector<16x32xf32>
    %c0_67 = arith.constant 0 : index
    %c0_68 = arith.constant 0 : index
    %c0_69 = arith.constant 0 : index
    %175 = vector.load %arg13[%c0_67, %c0_68, %c0_69] : memref<2x1x32xf32, #tpu.memory_space<vmem>>, vector<1x1x32xf32>
    %176 = vector.shape_cast %175 : vector<1x1x32xf32> to vector<1x32xf32>
    %177 = vector.broadcast %176 : vector<1x32xf32> to vector<16x32xf32>
    %178 = arith.addf %174, %177 : vector<16x32xf32>
    %179 = arith.addf %149, %178 : vector<16x32xf32>
    %c0_70 = arith.constant 0 : index
    %c0_71 = arith.constant 0 : index
    %c0_72 = arith.constant 0 : index
    %180 = vector.load %arg14[%c0_70, %c0_71, %c0_72] : memref<2x1x32xf32, #tpu.memory_space<vmem>>, vector<1x1x32xf32>
    %181 = vector.shape_cast %180 : vector<1x1x32xf32> to vector<1x32xf32>
    %c0_73 = arith.constant 0 : index
    %c0_74 = arith.constant 0 : index
    %c0_75 = arith.constant 0 : index
    %182 = vector.load %arg15[%c0_73, %c0_74, %c0_75] : memref<2x1x32xf32, #tpu.memory_space<vmem>>, vector<1x1x32xf32>
    %183 = vector.shape_cast %182 : vector<1x1x32xf32> to vector<1x32xf32>
    %cst_76 = arith.constant dense<0.000000e+00> : vector<16xf32>
    %184 = vector.multi_reduction <add>, %179, %cst_76 [1] : vector<16x32xf32> to vector<16xf32>
    %185 = vector.shape_cast %184 : vector<16xf32> to vector<16x1xf32>
    %cst_77 = arith.constant 3.200000e+01 : f32
    %186 = vector.broadcast %cst_77 : f32 to vector<16x1xf32>
    %187 = arith.divf %185, %186 : vector<16x1xf32>
    %188 = vector.broadcast %187 : vector<16x1xf32> to vector<16x32xf32>
    %189 = arith.subf %179, %188 : vector<16x32xf32>
    %190 = arith.mulf %189, %189 : vector<16x32xf32>
    %cst_78 = arith.constant dense<0.000000e+00> : vector<16xf32>
    %191 = vector.multi_reduction <add>, %190, %cst_78 [1] : vector<16x32xf32> to vector<16xf32>
    %192 = vector.shape_cast %191 : vector<16xf32> to vector<16x1xf32>
    %cst_79 = arith.constant 3.200000e+01 : f32
    %193 = vector.broadcast %cst_79 : f32 to vector<16x1xf32>
    %194 = arith.divf %192, %193 : vector<16x1xf32>
    %195 = vector.broadcast %187 : vector<16x1xf32> to vector<16x32xf32>
    %196 = arith.subf %179, %195 : vector<16x32xf32>
    %cst_80 = arith.constant 9.99999996E-13 : f32
    %197 = vector.broadcast %cst_80 : f32 to vector<16x1xf32>
    %198 = arith.addf %194, %197 : vector<16x1xf32>
    %199 = math.rsqrt %198 : vector<16x1xf32>
    %200 = vector.broadcast %199 : vector<16x1xf32> to vector<16x32xf32>
    %201 = arith.mulf %196, %200 : vector<16x32xf32>
    %202 = vector.broadcast %181 : vector<1x32xf32> to vector<16x32xf32>
    %203 = arith.mulf %201, %202 : vector<16x32xf32>
    %204 = vector.broadcast %183 : vector<1x32xf32> to vector<16x32xf32>
    %205 = arith.addf %203, %204 : vector<16x32xf32>
    %206 = arith.truncf %205 : vector<16x32xf32> to vector<16x32xbf16>
    %c1 = arith.constant 1 : index
    %c0_81 = arith.constant 0 : index
    %c0_82 = arith.constant 0 : index
    %207 = vector.load %arg4[%c1, %c0_81, %c0_82] : memref<2x32x96xbf16, #tpu.memory_space<vmem>>, vector<1x32x96xbf16>
    %208 = vector.shape_cast %207 : vector<1x32x96xbf16> to vector<32x96xbf16>
    %cst_83 = arith.constant dense<0.000000e+00> : vector<16x96xf32>
    %209 = tpu.matmul %206, %208, %cst_83 {dimension_numbers = #tpu.dot_dimension_numbers<[1], [0], [0], [1], [0, 0, 1, 1], [], []>} : vector<16x32xbf16>, vector<32x96xbf16>, vector<16x96xf32> -> vector<16x96xf32>
    %c1_84 = arith.constant 1 : index
    %c0_85 = arith.constant 0 : index
    %c0_86 = arith.constant 0 : index
    %210 = vector.load %arg5[%c1_84, %c0_85, %c0_86] : memref<2x1x96xf32, #tpu.memory_space<vmem>>, vector<1x1x96xf32>
    %211 = vector.shape_cast %210 : vector<1x1x96xf32> to vector<1x96xf32>
    %212 = vector.broadcast %211 : vector<1x96xf32> to vector<16x96xf32>
    %213 = arith.addf %209, %212 : vector<16x96xf32>
    %214 = vector.extract_strided_slice %213 {offsets = [0, 0], sizes = [16, 8], strides = [1, 1]} : vector<16x96xf32> to vector<16x8xf32>
    %215 = arith.truncf %214 : vector<16x8xf32> to vector<16x8xbf16>
    %216 = vector.extract_strided_slice %213 {offsets = [0, 32], sizes = [16, 8], strides = [1, 1]} : vector<16x96xf32> to vector<16x8xf32>
    %217 = arith.truncf %216 : vector<16x8xf32> to vector<16x8xbf16>
    %218 = vector.extract_strided_slice %213 {offsets = [0, 64], sizes = [16, 8], strides = [1, 1]} : vector<16x96xf32> to vector<16x8xf32>
    %219 = arith.truncf %218 : vector<16x8xf32> to vector<16x8xbf16>
    "tpu.trace_start"() <{level = 10 : i32, message = "qd,kd->qk"}> : () -> ()
    %cst_87 = arith.constant dense<0.000000e+00> : vector<16x16xf32>
    %220 = tpu.matmul %215, %217, %cst_87 {dimension_numbers = #tpu.dot_dimension_numbers<[1], [1], [0], [0], [0, 0, 1, 0], [], []>} : vector<16x8xbf16>, vector<16x8xbf16>, vector<16x16xf32> -> vector<16x16xf32>
    "tpu.trace_stop"() : () -> ()
    %221 = arith.addf %220, %25 : vector<16x16xf32>
    %cst_88 = arith.constant dense<0xFF800000> : vector<16xf32>
    %222 = vector.multi_reduction <maximumf>, %221, %cst_88 [1] : vector<16x16xf32> to vector<16xf32>
    %223 = vector.shape_cast %222 : vector<16xf32> to vector<16x1xf32>
    %224 = vector.broadcast %223 : vector<16x1xf32> to vector<16x16xf32>
    %225 = arith.subf %221, %224 : vector<16x16xf32>
    %226 = math.exp %225 : vector<16x16xf32>
    %cst_89 = arith.constant dense<0.000000e+00> : vector<16xf32>
    %227 = vector.multi_reduction <add>, %226, %cst_89 [1] : vector<16x16xf32> to vector<16xf32>
    %228 = vector.shape_cast %227 : vector<16xf32> to vector<16x1xf32>
    %229 = tpu.reciprocal %228 {approx = true} : vector<16x1xf32> -> vector<16x1xf32>
    %230 = vector.broadcast %229 : vector<16x1xf32> to vector<16x16xf32>
    %231 = arith.mulf %226, %230 : vector<16x16xf32>
    %232 = arith.truncf %231 : vector<16x16xf32> to vector<16x16xbf16>
    %cst_90 = arith.constant dense<0.000000e+00> : vector<16x8xf32>
    %233 = tpu.matmul %232, %219, %cst_90 {dimension_numbers = #tpu.dot_dimension_numbers<[1], [0], [0], [1], [0, 0, 1, 1], [], []>} : vector<16x16xbf16>, vector<16x8xbf16>, vector<16x8xf32> -> vector<16x8xf32>
    %234 = vector.extract_strided_slice %213 {offsets = [0, 8], sizes = [16, 8], strides = [1, 1]} : vector<16x96xf32> to vector<16x8xf32>
    %235 = arith.truncf %234 : vector<16x8xf32> to vector<16x8xbf16>
    %236 = vector.extract_strided_slice %213 {offsets = [0, 40], sizes = [16, 8], strides = [1, 1]} : vector<16x96xf32> to vector<16x8xf32>
    %237 = arith.truncf %236 : vector<16x8xf32> to vector<16x8xbf16>
    %238 = vector.extract_strided_slice %213 {offsets = [0, 72], sizes = [16, 8], strides = [1, 1]} : vector<16x96xf32> to vector<16x8xf32>
    %239 = arith.truncf %238 : vector<16x8xf32> to vector<16x8xbf16>
    "tpu.trace_start"() <{level = 10 : i32, message = "qd,kd->qk"}> : () -> ()
    %cst_91 = arith.constant dense<0.000000e+00> : vector<16x16xf32>
    %240 = tpu.matmul %235, %237, %cst_91 {dimension_numbers = #tpu.dot_dimension_numbers<[1], [1], [0], [0], [0, 0, 1, 0], [], []>} : vector<16x8xbf16>, vector<16x8xbf16>, vector<16x16xf32> -> vector<16x16xf32>
    "tpu.trace_stop"() : () -> ()
    %241 = arith.addf %240, %25 : vector<16x16xf32>
    %cst_92 = arith.constant dense<0xFF800000> : vector<16xf32>
    %242 = vector.multi_reduction <maximumf>, %241, %cst_92 [1] : vector<16x16xf32> to vector<16xf32>
    %243 = vector.shape_cast %242 : vector<16xf32> to vector<16x1xf32>
    %244 = vector.broadcast %243 : vector<16x1xf32> to vector<16x16xf32>
    %245 = arith.subf %241, %244 : vector<16x16xf32>
    %246 = math.exp %245 : vector<16x16xf32>
    %cst_93 = arith.constant dense<0.000000e+00> : vector<16xf32>
    %247 = vector.multi_reduction <add>, %246, %cst_93 [1] : vector<16x16xf32> to vector<16xf32>
    %248 = vector.shape_cast %247 : vector<16xf32> to vector<16x1xf32>
    %249 = tpu.reciprocal %248 {approx = true} : vector<16x1xf32> -> vector<16x1xf32>
    %250 = vector.broadcast %249 : vector<16x1xf32> to vector<16x16xf32>
    %251 = arith.mulf %246, %250 : vector<16x16xf32>
    %252 = arith.truncf %251 : vector<16x16xf32> to vector<16x16xbf16>
    %cst_94 = arith.constant dense<0.000000e+00> : vector<16x8xf32>
    %253 = tpu.matmul %252, %239, %cst_94 {dimension_numbers = #tpu.dot_dimension_numbers<[1], [0], [0], [1], [0, 0, 1, 1], [], []>} : vector<16x16xbf16>, vector<16x8xbf16>, vector<16x8xf32> -> vector<16x8xf32>
    %254 = vector.extract_strided_slice %213 {offsets = [0, 16], sizes = [16, 8], strides = [1, 1]} : vector<16x96xf32> to vector<16x8xf32>
    %255 = arith.truncf %254 : vector<16x8xf32> to vector<16x8xbf16>
    %256 = vector.extract_strided_slice %213 {offsets = [0, 48], sizes = [16, 8], strides = [1, 1]} : vector<16x96xf32> to vector<16x8xf32>
    %257 = arith.truncf %256 : vector<16x8xf32> to vector<16x8xbf16>
    %258 = vector.extract_strided_slice %213 {offsets = [0, 80], sizes = [16, 8], strides = [1, 1]} : vector<16x96xf32> to vector<16x8xf32>
    %259 = arith.truncf %258 : vector<16x8xf32> to vector<16x8xbf16>
    "tpu.trace_start"() <{level = 10 : i32, message = "qd,kd->qk"}> : () -> ()
    %cst_95 = arith.constant dense<0.000000e+00> : vector<16x16xf32>
    %260 = tpu.matmul %255, %257, %cst_95 {dimension_numbers = #tpu.dot_dimension_numbers<[1], [1], [0], [0], [0, 0, 1, 0], [], []>} : vector<16x8xbf16>, vector<16x8xbf16>, vector<16x16xf32> -> vector<16x16xf32>
    "tpu.trace_stop"() : () -> ()
    %261 = arith.addf %260, %25 : vector<16x16xf32>
    %cst_96 = arith.constant dense<0xFF800000> : vector<16xf32>
    %262 = vector.multi_reduction <maximumf>, %261, %cst_96 [1] : vector<16x16xf32> to vector<16xf32>
    %263 = vector.shape_cast %262 : vector<16xf32> to vector<16x1xf32>
    %264 = vector.broadcast %263 : vector<16x1xf32> to vector<16x16xf32>
    %265 = arith.subf %261, %264 : vector<16x16xf32>
    %266 = math.exp %265 : vector<16x16xf32>
    %cst_97 = arith.constant dense<0.000000e+00> : vector<16xf32>
    %267 = vector.multi_reduction <add>, %266, %cst_97 [1] : vector<16x16xf32> to vector<16xf32>
    %268 = vector.shape_cast %267 : vector<16xf32> to vector<16x1xf32>
    %269 = tpu.reciprocal %268 {approx = true} : vector<16x1xf32> -> vector<16x1xf32>
    %270 = vector.broadcast %269 : vector<16x1xf32> to vector<16x16xf32>
    %271 = arith.mulf %266, %270 : vector<16x16xf32>
    %272 = arith.truncf %271 : vector<16x16xf32> to vector<16x16xbf16>
    %cst_98 = arith.constant dense<0.000000e+00> : vector<16x8xf32>
    %273 = tpu.matmul %272, %259, %cst_98 {dimension_numbers = #tpu.dot_dimension_numbers<[1], [0], [0], [1], [0, 0, 1, 1], [], []>} : vector<16x16xbf16>, vector<16x8xbf16>, vector<16x8xf32> -> vector<16x8xf32>
    %274 = vector.extract_strided_slice %213 {offsets = [0, 24], sizes = [16, 8], strides = [1, 1]} : vector<16x96xf32> to vector<16x8xf32>
    %275 = arith.truncf %274 : vector<16x8xf32> to vector<16x8xbf16>
    %276 = vector.extract_strided_slice %213 {offsets = [0, 56], sizes = [16, 8], strides = [1, 1]} : vector<16x96xf32> to vector<16x8xf32>
    %277 = arith.truncf %276 : vector<16x8xf32> to vector<16x8xbf16>
    %278 = vector.extract_strided_slice %213 {offsets = [0, 88], sizes = [16, 8], strides = [1, 1]} : vector<16x96xf32> to vector<16x8xf32>
    %279 = arith.truncf %278 : vector<16x8xf32> to vector<16x8xbf16>
    "tpu.trace_start"() <{level = 10 : i32, message = "qd,kd->qk"}> : () -> ()
    %cst_99 = arith.constant dense<0.000000e+00> : vector<16x16xf32>
    %280 = tpu.matmul %275, %277, %cst_99 {dimension_numbers = #tpu.dot_dimension_numbers<[1], [1], [0], [0], [0, 0, 1, 0], [], []>} : vector<16x8xbf16>, vector<16x8xbf16>, vector<16x16xf32> -> vector<16x16xf32>
    "tpu.trace_stop"() : () -> ()
    %281 = arith.addf %280, %25 : vector<16x16xf32>
    %cst_100 = arith.constant dense<0xFF800000> : vector<16xf32>
    %282 = vector.multi_reduction <maximumf>, %281, %cst_100 [1] : vector<16x16xf32> to vector<16xf32>
    %283 = vector.shape_cast %282 : vector<16xf32> to vector<16x1xf32>
    %284 = vector.broadcast %283 : vector<16x1xf32> to vector<16x16xf32>
    %285 = arith.subf %281, %284 : vector<16x16xf32>
    %286 = math.exp %285 : vector<16x16xf32>
    %cst_101 = arith.constant dense<0.000000e+00> : vector<16xf32>
    %287 = vector.multi_reduction <add>, %286, %cst_101 [1] : vector<16x16xf32> to vector<16xf32>
    %288 = vector.shape_cast %287 : vector<16xf32> to vector<16x1xf32>
    %289 = tpu.reciprocal %288 {approx = true} : vector<16x1xf32> -> vector<16x1xf32>
    %290 = vector.broadcast %289 : vector<16x1xf32> to vector<16x16xf32>
    %291 = arith.mulf %286, %290 : vector<16x16xf32>
    %292 = arith.truncf %291 : vector<16x16xf32> to vector<16x16xbf16>
    %cst_102 = arith.constant dense<0.000000e+00> : vector<16x8xf32>
    %293 = tpu.matmul %292, %279, %cst_102 {dimension_numbers = #tpu.dot_dimension_numbers<[1], [0], [0], [1], [0, 0, 1, 1], [], []>} : vector<16x16xbf16>, vector<16x8xbf16>, vector<16x8xf32> -> vector<16x8xf32>
    %294 = tpu.concatenate %233, %253, %273, %293 in 1 : vector<16x8xf32>, vector<16x8xf32>, vector<16x8xf32>, vector<16x8xf32> -> vector<16x32xf32>
    %295 = arith.truncf %294 : vector<16x32xf32> to vector<16x32xbf16>
    %c1_103 = arith.constant 1 : index
    %c0_104 = arith.constant 0 : index
    %c0_105 = arith.constant 0 : index
    %296 = vector.load %arg6[%c1_103, %c0_104, %c0_105] : memref<2x32x32xbf16, #tpu.memory_space<vmem>>, vector<1x32x32xbf16>
    %297 = vector.shape_cast %296 : vector<1x32x32xbf16> to vector<32x32xbf16>
    %cst_106 = arith.constant dense<0.000000e+00> : vector<16x32xf32>
    %298 = tpu.matmul %295, %297, %cst_106 {dimension_numbers = #tpu.dot_dimension_numbers<[1], [0], [0], [1], [0, 0, 1, 1], [], []>} : vector<16x32xbf16>, vector<32x32xbf16>, vector<16x32xf32> -> vector<16x32xf32>
    %c1_107 = arith.constant 1 : index
    %c0_108 = arith.constant 0 : index
    %c0_109 = arith.constant 0 : index
    %299 = vector.load %arg7[%c1_107, %c0_108, %c0_109] : memref<2x1x32xf32, #tpu.memory_space<vmem>>, vector<1x1x32xf32>
    %300 = vector.shape_cast %299 : vector<1x1x32xf32> to vector<1x32xf32>
    %301 = vector.broadcast %300 : vector<1x32xf32> to vector<16x32xf32>
    %302 = arith.addf %298, %301 : vector<16x32xf32>
    %303 = arith.addf %205, %302 : vector<16x32xf32>
    %c1_110 = arith.constant 1 : index
    %c0_111 = arith.constant 0 : index
    %c0_112 = arith.constant 0 : index
    %304 = vector.load %arg8[%c1_110, %c0_111, %c0_112] : memref<2x1x32xf32, #tpu.memory_space<vmem>>, vector<1x1x32xf32>
    %305 = vector.shape_cast %304 : vector<1x1x32xf32> to vector<1x32xf32>
    %c1_113 = arith.constant 1 : index
    %c0_114 = arith.constant 0 : index
    %c0_115 = arith.constant 0 : index
    %306 = vector.load %arg9[%c1_113, %c0_114, %c0_115] : memref<2x1x32xf32, #tpu.memory_space<vmem>>, vector<1x1x32xf32>
    %307 = vector.shape_cast %306 : vector<1x1x32xf32> to vector<1x32xf32>
    %cst_116 = arith.constant dense<0.000000e+00> : vector<16xf32>
    %308 = vector.multi_reduction <add>, %303, %cst_116 [1] : vector<16x32xf32> to vector<16xf32>
    %309 = vector.shape_cast %308 : vector<16xf32> to vector<16x1xf32>
    %cst_117 = arith.constant 3.200000e+01 : f32
    %310 = vector.broadcast %cst_117 : f32 to vector<16x1xf32>
    %311 = arith.divf %309, %310 : vector<16x1xf32>
    %312 = vector.broadcast %311 : vector<16x1xf32> to vector<16x32xf32>
    %313 = arith.subf %303, %312 : vector<16x32xf32>
    %314 = arith.mulf %313, %313 : vector<16x32xf32>
    %cst_118 = arith.constant dense<0.000000e+00> : vector<16xf32>
    %315 = vector.multi_reduction <add>, %314, %cst_118 [1] : vector<16x32xf32> to vector<16xf32>
    %316 = vector.shape_cast %315 : vector<16xf32> to vector<16x1xf32>
    %cst_119 = arith.constant 3.200000e+01 : f32
    %317 = vector.broadcast %cst_119 : f32 to vector<16x1xf32>
    %318 = arith.divf %316, %317 : vector<16x1xf32>
    %319 = vector.broadcast %311 : vector<16x1xf32> to vector<16x32xf32>
    %320 = arith.subf %303, %319 : vector<16x32xf32>
    %cst_120 = arith.constant 9.99999996E-13 : f32
    %321 = vector.broadcast %cst_120 : f32 to vector<16x1xf32>
    %322 = arith.addf %318, %321 : vector<16x1xf32>
    %323 = math.rsqrt %322 : vector<16x1xf32>
    %324 = vector.broadcast %323 : vector<16x1xf32> to vector<16x32xf32>
    %325 = arith.mulf %320, %324 : vector<16x32xf32>
    %326 = vector.broadcast %305 : vector<1x32xf32> to vector<16x32xf32>
    %327 = arith.mulf %325, %326 : vector<16x32xf32>
    %328 = vector.broadcast %307 : vector<1x32xf32> to vector<16x32xf32>
    %329 = arith.addf %327, %328 : vector<16x32xf32>
    %330 = arith.truncf %329 : vector<16x32xf32> to vector<16x32xbf16>
    %c1_121 = arith.constant 1 : index
    %c0_122 = arith.constant 0 : index
    %c0_123 = arith.constant 0 : index
    %331 = vector.load %arg10[%c1_121, %c0_122, %c0_123] : memref<2x32x64xbf16, #tpu.memory_space<vmem>>, vector<1x32x64xbf16>
    %332 = vector.shape_cast %331 : vector<1x32x64xbf16> to vector<32x64xbf16>
    %cst_124 = arith.constant dense<0.000000e+00> : vector<16x64xf32>
    %333 = tpu.matmul %330, %332, %cst_124 {dimension_numbers = #tpu.dot_dimension_numbers<[1], [0], [0], [1], [0, 0, 1, 1], [], []>} : vector<16x32xbf16>, vector<32x64xbf16>, vector<16x64xf32> -> vector<16x64xf32>
    %c1_125 = arith.constant 1 : index
    %c0_126 = arith.constant 0 : index
    %c0_127 = arith.constant 0 : index
    %334 = vector.load %arg11[%c1_125, %c0_126, %c0_127] : memref<2x1x64xf32, #tpu.memory_space<vmem>>, vector<1x1x64xf32>
    %335 = vector.shape_cast %334 : vector<1x1x64xf32> to vector<1x64xf32>
    %336 = vector.broadcast %335 : vector<1x64xf32> to vector<16x64xf32>
    %337 = arith.addf %333, %336 : vector<16x64xf32>
    %338 = arith.mulf %337, %337 : vector<16x64xf32>
    %339 = arith.mulf %337, %338 : vector<16x64xf32>
    %cst_128 = arith.constant 4.471500e-02 : f32
    %340 = vector.broadcast %cst_128 : f32 to vector<16x64xf32>
    %341 = arith.mulf %340, %339 : vector<16x64xf32>
    %342 = arith.addf %337, %341 : vector<16x64xf32>
    %cst_129 = arith.constant 0.797884583 : f32
    %343 = vector.broadcast %cst_129 : f32 to vector<16x64xf32>
    %344 = arith.mulf %343, %342 : vector<16x64xf32>
    %345 = math.tanh %344 : vector<16x64xf32>
    %cst_130 = arith.constant 1.000000e+00 : f32
    %346 = vector.broadcast %cst_130 : f32 to vector<16x64xf32>
    %347 = arith.addf %346, %345 : vector<16x64xf32>
    %cst_131 = arith.constant 5.000000e-01 : f32
    %348 = vector.broadcast %cst_131 : f32 to vector<16x64xf32>
    %349 = arith.mulf %348, %347 : vector<16x64xf32>
    %350 = arith.mulf %337, %349 : vector<16x64xf32>
    %351 = arith.truncf %350 : vector<16x64xf32> to vector<16x64xbf16>
    %c1_132 = arith.constant 1 : index
    %c0_133 = arith.constant 0 : index
    %c0_134 = arith.constant 0 : index
    %352 = vector.load %arg12[%c1_132, %c0_133, %c0_134] : memref<2x64x32xbf16, #tpu.memory_space<vmem>>, vector<1x64x32xbf16>
    %353 = vector.shape_cast %352 : vector<1x64x32xbf16> to vector<64x32xbf16>
    %cst_135 = arith.constant dense<0.000000e+00> : vector<16x32xf32>
    %354 = tpu.matmul %351, %353, %cst_135 {dimension_numbers = #tpu.dot_dimension_numbers<[1], [0], [0], [1], [0, 0, 1, 1], [], []>} : vector<16x64xbf16>, vector<64x32xbf16>, vector<16x32xf32> -> vector<16x32xf32>
    %c1_136 = arith.constant 1 : index
    %c0_137 = arith.constant 0 : index
    %c0_138 = arith.constant 0 : index
    %355 = vector.load %arg13[%c1_136, %c0_137, %c0_138] : memref<2x1x32xf32, #tpu.memory_space<vmem>>, vector<1x1x32xf32>
    %356 = vector.shape_cast %355 : vector<1x1x32xf32> to vector<1x32xf32>
    %357 = vector.broadcast %356 : vector<1x32xf32> to vector<16x32xf32>
    %358 = arith.addf %354, %357 : vector<16x32xf32>
    %359 = arith.addf %329, %358 : vector<16x32xf32>
    %c1_139 = arith.constant 1 : index
    %c0_140 = arith.constant 0 : index
    %c0_141 = arith.constant 0 : index
    %360 = vector.load %arg14[%c1_139, %c0_140, %c0_141] : memref<2x1x32xf32, #tpu.memory_space<vmem>>, vector<1x1x32xf32>
    %361 = vector.shape_cast %360 : vector<1x1x32xf32> to vector<1x32xf32>
    %c1_142 = arith.constant 1 : index
    %c0_143 = arith.constant 0 : index
    %c0_144 = arith.constant 0 : index
    %362 = vector.load %arg15[%c1_142, %c0_143, %c0_144] : memref<2x1x32xf32, #tpu.memory_space<vmem>>, vector<1x1x32xf32>
    %363 = vector.shape_cast %362 : vector<1x1x32xf32> to vector<1x32xf32>
    %cst_145 = arith.constant dense<0.000000e+00> : vector<16xf32>
    %364 = vector.multi_reduction <add>, %359, %cst_145 [1] : vector<16x32xf32> to vector<16xf32>
    %365 = vector.shape_cast %364 : vector<16xf32> to vector<16x1xf32>
    %cst_146 = arith.constant 3.200000e+01 : f32
    %366 = vector.broadcast %cst_146 : f32 to vector<16x1xf32>
    %367 = arith.divf %365, %366 : vector<16x1xf32>
    %368 = vector.broadcast %367 : vector<16x1xf32> to vector<16x32xf32>
    %369 = arith.subf %359, %368 : vector<16x32xf32>
    %370 = arith.mulf %369, %369 : vector<16x32xf32>
    %cst_147 = arith.constant dense<0.000000e+00> : vector<16xf32>
    %371 = vector.multi_reduction <add>, %370, %cst_147 [1] : vector<16x32xf32> to vector<16xf32>
    %372 = vector.shape_cast %371 : vector<16xf32> to vector<16x1xf32>
    %cst_148 = arith.constant 3.200000e+01 : f32
    %373 = vector.broadcast %cst_148 : f32 to vector<16x1xf32>
    %374 = arith.divf %372, %373 : vector<16x1xf32>
    %375 = vector.broadcast %367 : vector<16x1xf32> to vector<16x32xf32>
    %376 = arith.subf %359, %375 : vector<16x32xf32>
    %cst_149 = arith.constant 9.99999996E-13 : f32
    %377 = vector.broadcast %cst_149 : f32 to vector<16x1xf32>
    %378 = arith.addf %374, %377 : vector<16x1xf32>
    %379 = math.rsqrt %378 : vector<16x1xf32>
    %380 = vector.broadcast %379 : vector<16x1xf32> to vector<16x32xf32>
    %381 = arith.mulf %376, %380 : vector<16x32xf32>
    %382 = vector.broadcast %361 : vector<1x32xf32> to vector<16x32xf32>
    %383 = arith.mulf %381, %382 : vector<16x32xf32>
    %384 = vector.broadcast %363 : vector<1x32xf32> to vector<16x32xf32>
    %385 = arith.addf %383, %384 : vector<16x32xf32>
    %386 = vector.extract_strided_slice %385 {offsets = [0, 0], sizes = [1, 32], strides = [1, 1]} : vector<16x32xf32> to vector<1x32xf32>
    %387 = vector.extract_strided_slice %385 {offsets = [8, 0], sizes = [1, 32], strides = [1, 1]} : vector<16x32xf32> to vector<1x32xf32>
    %388 = tpu.concatenate %386, %387 in 0 : vector<1x32xf32>, vector<1x32xf32> -> vector<2x32xf32>
    %c0_150 = arith.constant 0 : index
    %c0_151 = arith.constant 0 : index
    %389 = vector.load %arg16[%c0_150, %c0_151] : memref<32x128xf32, #tpu.memory_space<vmem>>, vector<32x128xf32>
    %cst_152 = arith.constant dense<0.000000e+00> : vector<2x128xf32>
    %390 = tpu.matmul %388, %389, %cst_152 {dimension_numbers = #tpu.dot_dimension_numbers<[1], [0], [0], [1], [0, 0, 1, 1], [], []>} : vector<2x32xf32>, vector<32x128xf32>, vector<2x128xf32> -> vector<2x128xf32>
    %c0_153 = arith.constant 0 : index
    %c0_154 = arith.constant 0 : index
    %391 = vector.load %arg17[%c0_153, %c0_154] : memref<1x128xf32, #tpu.memory_space<vmem>>, vector<1x128xf32>
    %392 = vector.broadcast %391 : vector<1x128xf32> to vector<2x128xf32>
    %393 = arith.addf %390, %392 : vector<2x128xf32>
    %c0_155 = arith.constant 0 : index
    %c0_156 = arith.constant 0 : index
    %394 = vector.load %arg18[%c0_155, %c0_156] : memref<2x128xf32, #tpu.memory_space<vmem>>, vector<2x128xf32>
    tpu.vector_store %arg18[%c0_155, %c0_156], %393 {strides = array<i32>} : memref<2x128xf32, #tpu.memory_space<vmem>>, vector<2x128xf32>,
    return
  }
}

</mosaic_0001>

<llo_original>
// kernel: class_model_forward.1
$region0: #{class_model_forward.1}
  #allocation0 [shape = 'u32[]', space=smem, size = 0x4, offset = 0x4, fixed_abs, tag = 'smem constant byte address 0x4 - core index']
  #allocation1 [shape = 'u32[72,128]{1,0:T(1,128)}', space=vmem, size = 0x9000, scoped, tag = 'internal scratch']
  %s0 = inlined_call_operand.vmem [shape: f32[16,32], index: 0, kind: input, shape index: {}]
  %s1 = inlined_call_operand.vmem [shape: f32[16,16], index: 1, kind: input, shape index: {}]
  %s2 = inlined_call_operand.vmem [shape: f32[1,32], index: 2, kind: input, shape index: {}]
  %s3 = inlined_call_operand.vmem [shape: f32[1,32], index: 3, kind: input, shape index: {}]
  %s4 = inlined_call_operand.vmem [shape: bf16[2,32,96], index: 4, kind: input, shape index: {}]
  %s5 = inlined_call_operand.vmem [shape: f32[2,1,96], index: 5, kind: input, shape index: {}]
  %s6 = inlined_call_operand.vmem [shape: bf16[2,32,32], index: 6, kind: input, shape index: {}]
  %s7 = inlined_call_operand.vmem [shape: f32[2,1,32], index: 7, kind: input, shape index: {}]
  %s8 = inlined_call_operand.vmem [shape: f32[2,1,32], index: 8, kind: input, shape index: {}]
  %s9 = inlined_call_operand.vmem [shape: f32[2,1,32], index: 9, kind: input, shape index: {}]
  %s10 = inlined_call_operand.vmem [shape: bf16[2,32,64], index: 10, kind: input, shape index: {}]
  %s11 = inlined_call_operand.vmem [shape: f32[2,1,64], index: 11, kind: input, shape index: {}]
  %s12 = inlined_call_operand.vmem [shape: bf16[2,64,32], index: 12, kind: input, shape index: {}]
  %s13 = inlined_call_operand.vmem [shape: f32[2,1,32], index: 13, kind: input, shape index: {}]
  %s14 = inlined_call_operand.vmem [shape: f32[2,1,32], index: 14, kind: input, shape index: {}]
  %s15 = inlined_call_operand.vmem [shape: f32[2,1,32], index: 15, kind: input, shape index: {}]
  %s16 = inlined_call_operand.vmem [shape: f32[32,128], index: 16, kind: input, shape index: {}]
  %s17 = inlined_call_operand.vmem [shape: f32[1,128], index: 17, kind: input, shape index: {}]
  %s18 = inlined_call_operand.hbm [shape: f32[2,128], index: 18, kind: output, shape index: {}]
  %s19 = sld [smem:[#allocation0]]
  $region82: #{class_model_forward.1} parent=0
    _
  %s21 = ssub.s32 1, %s19
  %s22 = scalar_select 0, %s21, %s19
  $region1: #{class_model_forward.1} parent=0
    #allocation2 [shape = 'u8[1024]{0}', space=vmem, size = 0x400, scoped, tag = 'output window, operand 0, single buffered']
    #allocation3 [shape = 's32[1]{0}', space=sflag, size = 0x4, scoped, tag = 'scoped memory for class_model_forward.1']
    %23 = vsyncpa [#allocation3], 0
    // Predicated region
    $region2: #{class_model_forward.1} parent=1 // pred_check
      _
    $region3: #{class_model_forward.1} parent=1 // pred_check_branch
      %25 = sbr.rel (0) target = $region5
    $region4: #{class_model_forward.1} parent=1 // pred_region
      _
    $region5: #{class_model_forward.1} parent=1 // pred_fallthru
      _
    // Predicated region
    $region6: #{class_model_forward.1} parent=1 // pred_check
      _
    $region7: #{class_model_forward.1} parent=1 // pred_check_branch
      %27 = sbr.rel (0) target = $region9
    $region8: #{class_model_forward.1} parent=1 // pred_region
      _
    $region9: #{class_model_forward.1} parent=1 // pred_fallthru
      _
    // Predicated region
    $region10: #{class_model_forward.1} parent=1 // pred_check
      _
    $region11: #{class_model_forward.1} parent=1 // pred_check_branch
      %29 = sbr.rel (0) target = $region13
    $region12: #{class_model_forward.1} parent=1 // pred_region
      _
    $region13: #{class_model_forward.1} parent=1 // pred_fallthru
      _
    // Predicated region
    $region14: #{class_model_forward.1} parent=1 // pred_check
      _
    $region15: #{class_model_forward.1} parent=1 // pred_check_branch
      %31 = sbr.rel (0) target = $region17
    $region16: #{class_model_forward.1} parent=1 // pred_region
      _
    $region17: #{class_model_forward.1} parent=1 // pred_fallthru
      _
    // Predicated region
    $region18: #{class_model_forward.1} parent=1 // pred_check
      _
    $region19: #{class_model_forward.1} parent=1 // pred_check_branch
      %33 = sbr.rel (0) target = $region21
    $region20: #{class_model_forward.1} parent=1 // pred_region
      _
    $region21: #{class_model_forward.1} parent=1 // pred_fallthru
      _
    // Predicated region
    $region22: #{class_model_forward.1} parent=1 // pred_check
      _
    $region23: #{class_model_forward.1} parent=1 // pred_check_branch
      %35 = sbr.rel (0) target = $region25
    $region24: #{class_model_forward.1} parent=1 // pred_region
      _
    $region25: #{class_model_forward.1} parent=1 // pred_fallthru
      _
    // Predicated region
    $region26: #{class_model_forward.1} parent=1 // pred_check
      _
    $region27: #{class_model_forward.1} parent=1 // pred_check_branch
      %37 = sbr.rel (0) target = $region29
    $region28: #{class_model_forward.1} parent=1 // pred_region
      _
    $region29: #{class_model_forward.1} parent=1 // pred_fallthru
      _
    // Predicated region
    $region30: #{class_model_forward.1} parent=1 // pred_check
      _
    $region31: #{class_model_forward.1} parent=1 // pred_check_branch
      %39 = sbr.rel (0) target = $region33
    $region32: #{class_model_forward.1} parent=1 // pred_region
      _
    $region33: #{class_model_forward.1} parent=1 // pred_fallthru
      _
    // Predicated region
    $region34: #{class_model_forward.1} parent=1 // pred_check
      _
    $region35: #{class_model_forward.1} parent=1 // pred_check_branch
      %41 = sbr.rel (0) target = $region37
    $region36: #{class_model_forward.1} parent=1 // pred_region
      _
    $region37: #{class_model_forward.1} parent=1 // pred_fallthru
      _
    // Predicated region
    $region38: #{class_model_forward.1} parent=1 // pred_check
      _
    $region39: #{class_model_forward.1} parent=1 // pred_check_branch
      %43 = sbr.rel (0) target = $region41
    $region40: #{class_model_forward.1} parent=1 // pred_region
      _
    $region41: #{class_model_forward.1} parent=1 // pred_fallthru
      _
    // Predicated region
    $region42: #{class_model_forward.1} parent=1 // pred_check
      _
    $region43: #{class_model_forward.1} parent=1 // pred_check_branch
      %45 = sbr.rel (0) target = $region45
    $region44: #{class_model_forward.1} parent=1 // pred_region
      _
    $region45: #{class_model_forward.1} parent=1 // pred_fallthru
      _
    // Predicated region
    $region46: #{class_model_forward.1} parent=1 // pred_check
      _
    $region47: #{class_model_forward.1} parent=1 // pred_check_branch
      %47 = sbr.rel (0) target = $region49
    $region48: #{class_model_forward.1} parent=1 // pred_region
      _
    $region49: #{class_model_forward.1} parent=1 // pred_fallthru
      _
    // Predicated region
    $region50: #{class_model_forward.1} parent=1 // pred_check
      _
    $region51: #{class_model_forward.1} parent=1 // pred_check_branch
      %49 = sbr.rel (0) target = $region53
    $region52: #{class_model_forward.1} parent=1 // pred_region
      _
    $region53: #{class_model_forward.1} parent=1 // pred_fallthru
      _
    // Predicated region
    $region54: #{class_model_forward.1} parent=1 // pred_check
      _
    $region55: #{class_model_forward.1} parent=1 // pred_check_branch
      %51 = sbr.rel (0) target = $region57
    $region56: #{class_model_forward.1} parent=1 // pred_region
      _
    $region57: #{class_model_forward.1} parent=1 // pred_fallthru
      _
    // Predicated region
    $region58: #{class_model_forward.1} parent=1 // pred_check
      _
    $region59: #{class_model_forward.1} parent=1 // pred_check_branch
      %53 = sbr.rel (0) target = $region61
    $region60: #{class_model_forward.1} parent=1 // pred_region
      _
    $region61: #{class_model_forward.1} parent=1 // pred_fallthru
      _
    // Predicated region
    $region62: #{class_model_forward.1} parent=1 // pred_check
      _
    $region63: #{class_model_forward.1} parent=1 // pred_check_branch
      %55 = sbr.rel (0) target = $region65
    $region64: #{class_model_forward.1} parent=1 // pred_region
      _
    $region65: #{class_model_forward.1} parent=1 // pred_fallthru
      _
    // Predicated region
    $region66: #{class_model_forward.1} parent=1 // pred_check
      _
    $region67: #{class_model_forward.1} parent=1 // pred_check_branch
      %57 = sbr.rel (0) target = $region69
    $region68: #{class_model_forward.1} parent=1 // pred_region
      _
    $region69: #{class_model_forward.1} parent=1 // pred_fallthru
      _
    // Predicated region
    $region70: #{class_model_forward.1} parent=1 // pred_check
      _
    $region71: #{class_model_forward.1} parent=1 // pred_check_branch
      %59 = sbr.rel (0) target = $region73
    $region72: #{class_model_forward.1} parent=1 // pred_region
      _
    $region73: #{class_model_forward.1} parent=1 // pred_fallthru
      _
    %v61 = vld [vmem:[%s0] sm:$0xff]
    %v62 = vld [vmem:[%s0 + $0x8] sm:$0xff]
    %v63 = vld [vmem:[%s2] sm:$0x1]
    %v64 = vld [vmem:[%s3] sm:$0x1]
    %vm65 = vcmask 261120
    %v66 = vsel %vm65, %v61, 0.0
    %67 = vadd.xlane.f32.xlu0 %v66
    %v68 = vpop.xlane.xlu0 %67
    %v69 = vsel %vm65, %v62, 0.0
    %70 = vadd.xlane.f32.xlu0 %v69
    %v71 = vpop.xlane.xlu0 %70
    %v72 = vrcp.pop 32.0
    %v73 = vmul.f32 32.0, %v72
    %v74 = vsub.f32 1.0, %v73
    %v75 = vmul.f32 %v72, %v74
    %v76 = vadd.f32 %v72, %v75
    %vm77 = vweird.f32 %v72
    %v78 = vsel %vm77, %v72, %v76
    %v79 = vmul.f32 %v68, %v78
    %v80 = vmul.f32 %v71, %v78
    %v81 = vsub.f32 %v61, %v79
    %v82 = vsub.f32 %v62, %v80
    %v83 = vmul.f32 %v81, %v81
    %v84 = vmul.f32 %v82, %v82
    %v85 = vsel %vm65, %v83, 0.0
    %86 = vadd.xlane.f32.xlu0 %v85
    %v87 = vpop.xlane.xlu0 %86
    %v88 = vsel %vm65, %v84, 0.0
    %89 = vadd.xlane.f32.xlu0 %v88
    %v90 = vpop.xlane.xlu0 %89
    %v91 = vmul.f32 %v87, %v78
    %v92 = vmul.f32 %v90, %v78
    %v93 = vadd.f32 %v91, 1e-12
    %v94 = vadd.f32 %v92, 1e-12
    %v95 = vrsqrt.pop %v93
    %v96 = vmul.f32 %v95, %v93
    %v97 = vmul.f32 %v96, %v95
    %v98 = vmul.f32 0.5, %v97
    %v99 = vsub.f32 1.5, %v98
    %v100 = vmul.f32 %v95, %v99
    %vm101 = vweird.f32 %v93
    %vm102 = vweird.f32 %v95
    %vm103 = vmor %vm101, %vm102
    %v104 = vsel %vm103, %v95, %v100
    %v105 = vrsqrt.pop %v94
    %v106 = vmul.f32 %v105, %v94
    %v107 = vmul.f32 %v106, %v105
    %v108 = vmul.f32 0.5, %v107
    %v109 = vsub.f32 1.5, %v108
    %v110 = vmul.f32 %v105, %v109
    %vm111 = vweird.f32 %v94
    %vm112 = vweird.f32 %v105
    %vm113 = vmor %vm111, %vm112
    %v114 = vsel %vm113, %v105, %v110
    %v115 = vmul.f32 %v81, %v104
    %v116 = vmul.f32 %v82, %v114
    %v118 = vperm.slane %v63, 0
    %v120 = vmul.f32 %v115, %v118
    %v121 = vmul.f32 %v116, %v118
    %v123 = vperm.slane %v64, 0
    %v125 = vadd.f32 %v120, %v123
    %v126 = vadd.f32 %v121, %v123
    %v127 = vld [vmem:[%s1] sm:$0xff]
    %v128 = vld [vmem:[%s1 + $0x8] sm:$0xff]
    %v129 = vpack.c.bf16 %v126, %v125
    %v130 = vld [vmem:[%s4] sm:$0xf]
    %v131 = vld [vmem:[%s4 + $0x4] sm:$0xf]
    %v132 = vld [vmem:[%s4 + $0x8] sm:$0xf]
    %v133 = vld [vmem:[%s4 + $0xc] sm:$0xf]
    %v134 = vld [vmem:[%s5] sm:$0x1]
    %v136 = vperm.slane %v134, 0
    %v142 = vunpack.c.l.b16 %v130
    %v143 = vunpack.c.l.b16 %v131
    %v144 = vunpack.c.l.b16 %v132
    %v145 = vunpack.c.l.b16 %v133
    %v146 = vpack.c.b16 %v143, %v142
    %v147 = vpack.c.b16 %v145, %v144
    %v151 = vsel %vm65, %v129, 0
    %153 = vmatpush.bf16.msra.mxu0 0
    %154 = vmatpush.bf16.msra.mxu0 0
    %155 = vmatpush.bf16.msra.mxu0 0
    %156 = vmatpush.bf16.msra.mxu0 0
    %157 = vmatpush.bf16.msra.mxu0 0
    %158 = vmatpush.bf16.msra.mxu0 0
    %159 = vmatpush.bf16.msra.mxu0 %v147
    %160 = vmatpush.bf16.msra.mxu0 %v146
    %161 = vmatmul.bf16.gmra.mxu0 %v151
    %v162 = vpop.f32.mrf.mxu0
    %v163 = vadd.f32 %v136, %v162
    %v164 = vpop.f32.mrf.mxu0
    %v165 = vadd.f32 %v136, %v164
    %166 = vdwg.mxu0
    %v167 = vpack.c.bf16 %v165, %v163
    %169 = vrot.lane.b32.xlu0 %v167, 96
    %v170 = vpop.permute.xlu0 %169
    %vm171 = vcmask 64512
    %v173 = vsel %vm171, %v167, 0
    %v176 = vsel %vm171, %v170, 0
    %178 = vmatpush.bf16.xpose.msra.mxu0 0
    %179 = vmatpush.bf16.xpose.msra.mxu0 0
    %180 = vmatpush.bf16.xpose.msra.mxu0 0
    %181 = vmatpush.bf16.xpose.msra.mxu0 0
    %182 = vmatpush.bf16.xpose.msra.mxu0 0
    %183 = vmatpush.bf16.xpose.msra.mxu0 0
    %184 = vmatpush.bf16.xpose.msra.mxu0 0
    %185 = vmatpush.bf16.xpose.msra.mxu0 %v176
    %186 = vmatmul.bf16.gmra.mxu0 %v173
    %v187 = vpop.f32.mrf.mxu0
    %v188 = vadd.f32 %v127, %v187
    %v189 = vpop.f32.mrf.mxu0
    %v190 = vadd.f32 %v128, %v189
    %191 = vdwg.mxu0
    %vm192 = vcmask 130048
    %v193 = vsel %vm192, %v188, -inf
    %194 = vmax.xlane.f32.xlu0 %v193
    %v195 = vpop.xlane.xlu0 %194
    %v196 = vsel %vm192, %v190, -inf
    %197 = vmax.xlane.f32.xlu0 %v196
    %v198 = vpop.xlane.xlu0 %197
    %v199 = vsub.f32 %v188, %v195
    %v200 = vsub.f32 %v190, %v198
    %v201 = vmul.f32 %v199, 1.442695
    %v202 = vpow.pop %v201
    %v203 = vmul.f32 %v200, 1.442695
    %v204 = vpow.pop %v203
    %v205 = vsel %vm192, %v202, 0.0
    %206 = vadd.xlane.f32.xlu0 %v205
    %v207 = vpop.xlane.xlu0 %206
    %v208 = vsel %vm192, %v204, 0.0
    %209 = vadd.xlane.f32.xlu0 %v208
    %v210 = vpop.xlane.xlu0 %209
    %v211 = vrcp.pop %v207
    %v212 = vrcp.pop %v210
    %v213 = vmul.f32 %v202, %v211
    %v214 = vmul.f32 %v204, %v212
    %v215 = vpack.c.bf16 %v214, %v213
    %216 = vrot.lane.b32.xlu0 %v167, 64
    %v217 = vpop.permute.xlu0 %216
    %v220 = vsel %vm192, %v215, 0
    %222 = vmatpush.bf16.msra.mxu0 0
    %223 = vmatpush.bf16.msra.mxu0 0
    %224 = vmatpush.bf16.msra.mxu0 0
    %225 = vmatpush.bf16.msra.mxu0 0
    %226 = vmatpush.bf16.msra.mxu0 0
    %227 = vmatpush.bf16.msra.mxu0 0
    %228 = vmatpush.bf16.msra.mxu0 0
    %229 = vmatpush.bf16.msra.mxu0 %v217
    %230 = vmatmul.bf16.gmra.mxu0 %v220
    %v231 = vpop.f32.mrf.mxu0
    %v232 = vadd.f32 0.0, %v231
    %v233 = vpop.f32.mrf.mxu0
    %v234 = vadd.f32 0.0, %v233
    %235 = vdwg.mxu0
    %236 = vrot.lane.b32.xlu0 %v167, 120
    %v237 = vpop.permute.xlu0 %236
    %238 = vrot.lane.b32.xlu0 %v167, 88
    %v239 = vpop.permute.xlu0 %238
    %v241 = vsel %vm171, %v237, 0
    %v244 = vsel %vm171, %v239, 0
    %246 = vmatpush.bf16.xpose.msra.mxu0 0
    %247 = vmatpush.bf16.xpose.msra.mxu0 0
    %248 = vmatpush.bf16.xpose.msra.mxu0 0
    %249 = vmatpush.bf16.xpose.msra.mxu0 0
    %250 = vmatpush.bf16.xpose.msra.mxu0 0
    %251 = vmatpush.bf16.xpose.msra.mxu0 0
    %252 = vmatpush.bf16.xpose.msra.mxu0 0
    %253 = vmatpush.bf16.xpose.msra.mxu0 %v244
    %254 = vmatmul.bf16.gmra.mxu0 %v241
    %v255 = vpop.f32.mrf.mxu0
    %v256 = vadd.f32 %v127, %v255
    %v257 = vpop.f32.mrf.mxu0
    %v258 = vadd.f32 %v128, %v257
    %259 = vdwg.mxu0
    %v260 = vsel %vm192, %v256, -inf
    %261 = vmax.xlane.f32.xlu0 %v260
    %v262 = vpop.xlane.xlu0 %261
    %v263 = vsel %vm192, %v258, -inf
    %264 = vmax.xlane.f32.xlu0 %v263
    %v265 = vpop.xlane.xlu0 %264
    %v266 = vsub.f32 %v256, %v262
    %v267 = vsub.f32 %v258, %v265
    %v268 = vmul.f32 %v266, 1.442695
    %v269 = vpow.pop %v268
    %v270 = vmul.f32 %v267, 1.442695
    %v271 = vpow.pop %v270
    %v272 = vsel %vm192, %v269, 0.0
    %273 = vadd.xlane.f32.xlu0 %v272
    %v274 = vpop.xlane.xlu0 %273
    %v275 = vsel %vm192, %v271, 0.0
    %276 = vadd.xlane.f32.xlu0 %v275
    %v277 = vpop.xlane.xlu0 %276
    %v278 = vrcp.pop %v274
    %v279 = vrcp.pop %v277
    %v280 = vmul.f32 %v269, %v278
    %v281 = vmul.f32 %v271, %v279
    %v282 = vpack.c.bf16 %v281, %v280
    %283 = vrot.lane.b32.xlu0 %v167, 56
    %v284 = vpop.permute.xlu0 %283
    %v287 = vsel %vm192, %v282, 0
    %289 = vmatpush.bf16.msra.mxu0 0
    %290 = vmatpush.bf16.msra.mxu0 0
    %291 = vmatpush.bf16.msra.mxu0 0
    %292 = vmatpush.bf16.msra.mxu0 0
    %293 = vmatpush.bf16.msra.mxu0 0
    %294 = vmatpush.bf16.msra.mxu0 0
    %295 = vmatpush.bf16.msra.mxu0 0
    %296 = vmatpush.bf16.msra.mxu0 %v284
    %297 = vmatmul.bf16.gmra.mxu0 %v287
    %v298 = vpop.f32.mrf.mxu0
    %v299 = vadd.f32 0.0, %v298
    %v300 = vpop.f32.mrf.mxu0
    %v301 = vadd.f32 0.0, %v300
    %302 = vdwg.mxu0
    %303 = vrot.lane.b32.xlu0 %v167, 112
    %v304 = vpop.permute.xlu0 %303
    %305 = vrot.lane.b32.xlu0 %v167, 80
    %v306 = vpop.permute.xlu0 %305
    %v308 = vsel %vm171, %v304, 0
    %v311 = vsel %vm171, %v306, 0
    %313 = vmatpush.bf16.xpose.msra.mxu0 0
    %314 = vmatpush.bf16.xpose.msra.mxu0 0
    %315 = vmatpush.bf16.xpose.msra.mxu0 0
    %316 = vmatpush.bf16.xpose.msra.mxu0 0
    %317 = vmatpush.bf16.xpose.msra.mxu0 0
    %318 = vmatpush.bf16.xpose.msra.mxu0 0
    %319 = vmatpush.bf16.xpose.msra.mxu0 0
    %320 = vmatpush.bf16.xpose.msra.mxu0 %v311
    %321 = vmatmul.bf16.gmra.mxu0 %v308
    %v322 = vpop.f32.mrf.mxu0
    %v323 = vadd.f32 %v127, %v322
    %v324 = vpop.f32.mrf.mxu0
    %v325 = vadd.f32 %v128, %v324
    %326 = vdwg.mxu0
    %v327 = vsel %vm192, %v323, -inf
    %328 = vmax.xlane.f32.xlu0 %v327
    %v329 = vpop.xlane.xlu0 %328
    %v330 = vsel %vm192, %v325, -inf
    %331 = vmax.xlane.f32.xlu0 %v330
    %v332 = vpop.xlane.xlu0 %331
    %v333 = vsub.f32 %v323, %v329
    %v334 = vsub.f32 %v325, %v332
    %v335 = vmul.f32 %v333, 1.442695
    %v336 = vpow.pop %v335
    %v337 = vmul.f32 %v334, 1.442695
    %v338 = vpow.pop %v337
    %v339 = vsel %vm192, %v336, 0.0
    %340 = vadd.xlane.f32.xlu0 %v339
    %v341 = vpop.xlane.xlu0 %340
    %v342 = vsel %vm192, %v338, 0.0
    %343 = vadd.xlane.f32.xlu0 %v342
    %v344 = vpop.xlane.xlu0 %343
    %v345 = vrcp.pop %v341
    %v346 = vrcp.pop %v344
    %v347 = vmul.f32 %v336, %v345
    %v348 = vmul.f32 %v338, %v346
    %v349 = vpack.c.bf16 %v348, %v347
    %350 = vrot.lane.b32.xlu0 %v167, 48
    %v351 = vpop.permute.xlu0 %350
    %v354 = vsel %vm192, %v349, 0
    %356 = vmatpush.bf16.msra.mxu0 0
    %357 = vmatpush.bf16.msra.mxu0 0
    %358 = vmatpush.bf16.msra.mxu0 0
    %359 = vmatpush.bf16.msra.mxu0 0
    %360 = vmatpush.bf16.msra.mxu0 0
    %361 = vmatpush.bf16.msra.mxu0 0
    %362 = vmatpush.bf16.msra.mxu0 0
    %363 = vmatpush.bf16.msra.mxu0 %v351
    %364 = vmatmul.bf16.gmra.mxu0 %v354
    %v365 = vpop.f32.mrf.mxu0
    %v366 = vadd.f32 0.0, %v365
    %v367 = vpop.f32.mrf.mxu0
    %v368 = vadd.f32 0.0, %v367
    %369 = vdwg.mxu0
    %370 = vrot.lane.b32.xlu0 %v167, 104
    %v371 = vpop.permute.xlu0 %370
    %372 = vrot.lane.b32.xlu0 %v167, 72
    %v373 = vpop.permute.xlu0 %372
    %v375 = vsel %vm171, %v371, 0
    %v378 = vsel %vm171, %v373, 0
    %380 = vmatpush.bf16.xpose.msra.mxu0 0
    %381 = vmatpush.bf16.xpose.msra.mxu0 0
    %382 = vmatpush.bf16.xpose.msra.mxu0 0
    %383 = vmatpush.bf16.xpose.msra.mxu0 0
    %384 = vmatpush.bf16.xpose.msra.mxu0 0
    %385 = vmatpush.bf16.xpose.msra.mxu0 0
    %386 = vmatpush.bf16.xpose.msra.mxu0 0
    %387 = vmatpush.bf16.xpose.msra.mxu0 %v378
    %388 = vmatmul.bf16.gmra.mxu0 %v375
    %v389 = vpop.f32.mrf.mxu0
    %v390 = vadd.f32 %v127, %v389
    %v391 = vpop.f32.mrf.mxu0
    %v392 = vadd.f32 %v128, %v391
    %393 = vdwg.mxu0
    %v394 = vsel %vm192, %v390, -inf
    %395 = vmax.xlane.f32.xlu0 %v394
    %v396 = vpop.xlane.xlu0 %395
    %v397 = vsel %vm192, %v392, -inf
    %398 = vmax.xlane.f32.xlu0 %v397
    %v399 = vpop.xlane.xlu0 %398
    %v400 = vsub.f32 %v390, %v396
    %v401 = vsub.f32 %v392, %v399
    %v402 = vmul.f32 %v400, 1.442695
    %v403 = vpow.pop %v402
    %v404 = vmul.f32 %v401, 1.442695
    %v405 = vpow.pop %v404
    %v406 = vsel %vm192, %v403, 0.0
    %407 = vadd.xlane.f32.xlu0 %v406
    %v408 = vpop.xlane.xlu0 %407
    %v409 = vsel %vm192, %v405, 0.0
    %410 = vadd.xlane.f32.xlu0 %v409
    %v411 = vpop.xlane.xlu0 %410
    %v412 = vrcp.pop %v408
    %v413 = vrcp.pop %v411
    %v414 = vmul.f32 %v403, %v412
    %v415 = vmul.f32 %v405, %v413
    %v416 = vpack.c.bf16 %v415, %v414
    %417 = vrot.lane.b32.xlu0 %v167, 40
    %v418 = vpop.permute.xlu0 %417
    %v421 = vsel %vm192, %v416, 0
    %423 = vmatpush.bf16.msra.mxu0 0
    %424 = vmatpush.bf16.msra.mxu0 0
    %425 = vmatpush.bf16.msra.mxu0 0
    %426 = vmatpush.bf16.msra.mxu0 0
    %427 = vmatpush.bf16.msra.mxu0 0
    %428 = vmatpush.bf16.msra.mxu0 0
    %429 = vmatpush.bf16.msra.mxu0 0
    %430 = vmatpush.bf16.msra.mxu0 %v418
    %431 = vmatmul.bf16.gmra.mxu0 %v421
    %v432 = vpop.f32.mrf.mxu0
    %v433 = vadd.f32 0.0, %v432
    %v434 = vpop.f32.mrf.mxu0
    %v435 = vadd.f32 0.0, %v434
    %436 = vdwg.mxu0
    %439 = vrot.lane.b32.xlu0 %v299, 8
    %v440 = vpop.permute.xlu0 %439
    %441 = vrot.lane.b32.xlu0 %v301, 8
    %v442 = vpop.permute.xlu0 %441
    %447 = vrot.lane.b32.xlu0 %v366, 16
    %v448 = vpop.permute.xlu0 %447
    %449 = vrot.lane.b32.xlu0 %v368, 16
    %v450 = vpop.permute.xlu0 %449
    %455 = vrot.lane.b32.xlu0 %v433, 24
    %v456 = vpop.permute.xlu0 %455
    %457 = vrot.lane.b32.xlu0 %v435, 24
    %v458 = vpop.permute.xlu0 %457
    %v461 = vsel %vm171, %v232, %v440
    %v462 = vsel %vm171, %v234, %v442
    %v463 = vsel %vm192, %v461, %v448
    %v464 = vsel %vm192, %v462, %v450
    %vm465 = vcmask 195584
    %v466 = vsel %vm465, %v463, %v456
    %v467 = vsel %vm465, %v464, %v458
    %v468 = vpack.c.bf16 %v467, %v466
    %v469 = vld [vmem:[%s6] sm:$0xf]
    %v470 = vld [vmem:[%s6 + $0x4] sm:$0xf]
    %v471 = vld [vmem:[%s6 + $0x8] sm:$0xf]
    %v472 = vld [vmem:[%s6 + $0xc] sm:$0xf]
    %v473 = vld [vmem:[%s7] sm:$0x1]
    %v475 = vperm.slane %v473, 0
    %v481 = vunpack.c.l.b16 %v469
    %v482 = vunpack.c.l.b16 %v470
    %v483 = vunpack.c.l.b16 %v471
    %v484 = vunpack.c.l.b16 %v472
    %v485 = vpack.c.b16 %v482, %v481
    %v486 = vpack.c.b16 %v484, %v483
    %v490 = vsel %vm65, %v468, 0
    %492 = vmatpush.bf16.msra.mxu0 0
    %493 = vmatpush.bf16.msra.mxu0 0
    %494 = vmatpush.bf16.msra.mxu0 0
    %495 = vmatpush.bf16.msra.mxu0 0
    %496 = vmatpush.bf16.msra.mxu0 0
    %497 = vmatpush.bf16.msra.mxu0 0
    %498 = vmatpush.bf16.msra.mxu0 %v486
    %499 = vmatpush.bf16.msra.mxu0 %v485
    %500 = vmatmul.bf16.gmra.mxu0 %v490
    %v501 = vpop.f32.mrf.mxu0
    %v502 = vadd.f32 %v475, %v501
    %v503 = vpop.f32.mrf.mxu0
    %v504 = vadd.f32 %v475, %v503
    %505 = vdwg.mxu0
    %v506 = vadd.f32 %v125, %v502
    %v507 = vadd.f32 %v126, %v504
    %v508 = vld [vmem:[%s8] sm:$0x1]
    %v509 = vld [vmem:[%s9] sm:$0x1]
    %v510 = vsel %vm65, %v506, 0.0
    %511 = vadd.xlane.f32.xlu0 %v510
    %v512 = vpop.xlane.xlu0 %511
    %v513 = vsel %vm65, %v507, 0.0
    %514 = vadd.xlane.f32.xlu0 %v513
    %v515 = vpop.xlane.xlu0 %514
    %v516 = vmul.f32 %v512, %v78
    %v517 = vmul.f32 %v515, %v78
    %v518 = vsub.f32 %v506, %v516
    %v519 = vsub.f32 %v507, %v517
    %v520 = vmul.f32 %v518, %v518
    %v521 = vmul.f32 %v519, %v519
    %v522 = vsel %vm65, %v520, 0.0
    %523 = vadd.xlane.f32.xlu0 %v522
    %v524 = vpop.xlane.xlu0 %523
    %v525 = vsel %vm65, %v521, 0.0
    %526 = vadd.xlane.f32.xlu0 %v525
    %v527 = vpop.xlane.xlu0 %526
    %v528 = vmul.f32 %v524, %v78
    %v529 = vmul.f32 %v527, %v78
    %v530 = vadd.f32 %v528, 1e-12
    %v531 = vadd.f32 %v529, 1e-12
    %v532 = vrsqrt.pop %v530
    %v533 = vmul.f32 %v532, %v530
    %v534 = vmul.f32 %v533, %v532
    %v535 = vmul.f32 0.5, %v534
    %v536 = vsub.f32 1.5, %v535
    %v537 = vmul.f32 %v532, %v536
    %vm538 = vweird.f32 %v530
    %vm539 = vweird.f32 %v532
    %vm540 = vmor %vm538, %vm539
    %v541 = vsel %vm540, %v532, %v537
    %v542 = vrsqrt.pop %v531
    %v543 = vmul.f32 %v542, %v531
    %v544 = vmul.f32 %v543, %v542
    %v545 = vmul.f32 0.5, %v544
    %v546 = vsub.f32 1.5, %v545
    %v547 = vmul.f32 %v542, %v546
    %vm548 = vweird.f32 %v531
    %vm549 = vweird.f32 %v542
    %vm550 = vmor %vm548, %vm549
    %v551 = vsel %vm550, %v542, %v547
    %v552 = vmul.f32 %v518, %v541
    %v553 = vmul.f32 %v519, %v551
    %v555 = vperm.slane %v508, 0
    %v557 = vmul.f32 %v552, %v555
    %v558 = vmul.f32 %v553, %v555
    %v560 = vperm.slane %v509, 0
    %v562 = vadd.f32 %v557, %v560
    %v563 = vadd.f32 %v558, %v560
    %v564 = vpack.c.bf16 %v563, %v562
    %v565 = vld [vmem:[%s10] sm:$0xf]
    %v566 = vld [vmem:[%s10 + $0x4] sm:$0xf]
    %v567 = vld [vmem:[%s10 + $0x8] sm:$0xf]
    %v568 = vld [vmem:[%s10 + $0xc] sm:$0xf]
    %v569 = vld [vmem:[%s11] sm:$0x1]
    %v571 = vperm.slane %v569, 0
    %v577 = vunpack.c.l.b16 %v565
    %v578 = vunpack.c.l.b16 %v566
    %v579 = vunpack.c.l.b16 %v567
    %v580 = vunpack.c.l.b16 %v568
    %v581 = vpack.c.b16 %v578, %v577
    %v582 = vpack.c.b16 %v580, %v579
    %v586 = vsel %vm65, %v564, 0
    %588 = vmatpush.bf16.msra.mxu0 0
    %589 = vmatpush.bf16.msra.mxu0 0
    %590 = vmatpush.bf16.msra.mxu0 0
    %591 = vmatpush.bf16.msra.mxu0 0
    %592 = vmatpush.bf16.msra.mxu0 0
    %593 = vmatpush.bf16.msra.mxu0 0
    %594 = vmatpush.bf16.msra.mxu0 %v582
    %595 = vmatpush.bf16.msra.mxu0 %v581
    %596 = vmatmul.bf16.gmra.mxu0 %v586
    %v597 = vpop.f32.mrf.mxu0
    %v598 = vadd.f32 %v571, %v597
    %v599 = vpop.f32.mrf.mxu0
    %v600 = vadd.f32 %v571, %v599
    %601 = vdwg.mxu0
    %v602 = vmul.f32 %v598, %v598
    %v603 = vmul.f32 %v600, %v600
    %v604 = vmul.f32 %v598, %v602
    %v605 = vmul.f32 %v600, %v603
    %v606 = vmul.f32 %v604, 0.044715
    %v607 = vmul.f32 %v605, 0.044715
    %v608 = vadd.f32 %v598, %v606
    %v609 = vadd.f32 %v600, %v607
    %v610 = vmul.f32 %v608, 0.7978846
    %v611 = vmul.f32 %v609, 0.7978846
    %v612 = vtanh.pop %v610
    %v613 = vtanh.pop %v611
    %v614 = vadd.f32 %v612, 1.0
    %v615 = vadd.f32 %v613, 1.0
    %v616 = vmul.f32 %v614, 0.5
    %v617 = vmul.f32 %v615, 0.5
    %v618 = vmul.f32 %v598, %v616
    %v619 = vmul.f32 %v600, %v617
    %v620 = vpack.c.bf16 %v619, %v618
    %v621 = vld [vmem:[%s12] sm:$0xf]
    %v622 = vld [vmem:[%s12 + $0x4] sm:$0xf]
    %v623 = vld [vmem:[%s12 + $0x8] sm:$0xf]
    %v624 = vld [vmem:[%s12 + $0xc] sm:$0xf]
    %v625 = vld [vmem:[%s12 + $0x10] sm:$0xf]
    %v626 = vld [vmem:[%s12 + $0x14] sm:$0xf]
    %v627 = vld [vmem:[%s12 + $0x18] sm:$0xf]
    %v628 = vld [vmem:[%s12 + $0x1c] sm:$0xf]
    %v629 = vld [vmem:[%s13] sm:$0x1]
    %v631 = vperm.slane %v629, 0
    %v641 = vunpack.c.l.b16 %v621
    %v642 = vunpack.c.l.b16 %v622
    %v643 = vunpack.c.l.b16 %v623
    %v644 = vunpack.c.l.b16 %v624
    %v645 = vunpack.c.l.b16 %v625
    %v646 = vunpack.c.l.b16 %v626
    %v647 = vunpack.c.l.b16 %v627
    %v648 = vunpack.c.l.b16 %v628
    %v649 = vpack.c.b16 %v642, %v641
    %v650 = vpack.c.b16 %v644, %v643
    %v651 = vpack.c.b16 %v646, %v645
    %v652 = vpack.c.b16 %v648, %v647
    %vm657 = vcmask 523264
    %v659 = vsel %vm657, %v620, 0
    %661 = vmatpush.bf16.msra.mxu0 0
    %662 = vmatpush.bf16.msra.mxu0 0
    %663 = vmatpush.bf16.msra.mxu0 0
    %664 = vmatpush.bf16.msra.mxu0 0
    %665 = vmatpush.bf16.msra.mxu0 %v652
    %666 = vmatpush.bf16.msra.mxu0 %v651
    %667 = vmatpush.bf16.msra.mxu0 %v650
    %668 = vmatpush.bf16.msra.mxu0 %v649
    %669 = vmatmul.bf16.gmra.mxu0 %v659
    %v670 = vpop.f32.mrf.mxu0
    %v671 = vadd.f32 %v631, %v670
    %v672 = vpop.f32.mrf.mxu0
    %v673 = vadd.f32 %v631, %v672
    %674 = vdwg.mxu0
    %v675 = vadd.f32 %v562, %v671
    %v676 = vadd.f32 %v563, %v673
    %v677 = vld [vmem:[%s14] sm:$0x1]
    %v678 = vld [vmem:[%s15] sm:$0x1]
    %v679 = vsel %vm65, %v675, 0.0
    %680 = vadd.xlane.f32.xlu0 %v679
    %v681 = vpop.xlane.xlu0 %680
    %v682 = vsel %vm65, %v676, 0.0
    %683 = vadd.xlane.f32.xlu0 %v682
    %v684 = vpop.xlane.xlu0 %683
    %v685 = vmul.f32 %v681, %v78
    %v686 = vmul.f32 %v684, %v78
    %v687 = vsub.f32 %v675, %v685
    %v688 = vsub.f32 %v676, %v686
    %v689 = vmul.f32 %v687, %v687
    %v690 = vmul.f32 %v688, %v688
    %v691 = vsel %vm65, %v689, 0.0
    %692 = vadd.xlane.f32.xlu0 %v691
    %v693 = vpop.xlane.xlu0 %692
    %v694 = vsel %vm65, %v690, 0.0
    %695 = vadd.xlane.f32.xlu0 %v694
    %v696 = vpop.xlane.xlu0 %695
    %v697 = vmul.f32 %v693, %v78
    %v698 = vmul.f32 %v696, %v78
    %v699 = vadd.f32 %v697, 1e-12
    %v700 = vadd.f32 %v698, 1e-12
    %v701 = vrsqrt.pop %v699
    %v702 = vmul.f32 %v701, %v699
    %v703 = vmul.f32 %v702, %v701
    %v704 = vmul.f32 0.5, %v703
    %v705 = vsub.f32 1.5, %v704
    %v706 = vmul.f32 %v701, %v705
    %vm707 = vweird.f32 %v699
    %vm708 = vweird.f32 %v701
    %vm709 = vmor %vm707, %vm708
    %v710 = vsel %vm709, %v701, %v706
    %v711 = vrsqrt.pop %v700
    %v712 = vmul.f32 %v711, %v700
    %v713 = vmul.f32 %v712, %v711
    %v714 = vmul.f32 0.5, %v713
    %v715 = vsub.f32 1.5, %v714
    %v716 = vmul.f32 %v711, %v715
    %vm717 = vweird.f32 %v700
    %vm718 = vweird.f32 %v711
    %vm719 = vmor %vm717, %vm718
    %v720 = vsel %vm719, %v711, %v716
    %v721 = vmul.f32 %v687, %v710
    %v722 = vmul.f32 %v688, %v720
    %v724 = vperm.slane %v677, 0
    %v726 = vmul.f32 %v721, %v724
    %v727 = vmul.f32 %v722, %v724
    %v729 = vperm.slane %v678, 0
    %v731 = vadd.f32 %v726, %v729
    %v732 = vadd.f32 %v727, %v729
    %v733 = vpack.c.bf16 %v732, %v731
    %s734 = scalar_lea.vmem %s4, 16
    %v735 = vld [vmem:[%s734] sm:$0xf]
    %v736 = vld [vmem:[%s734 + $0x4] sm:$0xf]
    %v737 = vld [vmem:[%s734 + $0x8] sm:$0xf]
    %v738 = vld [vmem:[%s734 + $0xc] sm:$0xf]
    %s739 = scalar_lea.vmem %s5, 1
    %v740 = vld [vmem:[%s739] sm:$0x1]
    %v742 = vperm.slane %v740, 0
    %v748 = vunpack.c.l.b16 %v735
    %v749 = vunpack.c.l.b16 %v736
    %v750 = vunpack.c.l.b16 %v737
    %v751 = vunpack.c.l.b16 %v738
    %v752 = vpack.c.b16 %v749, %v748
    %v753 = vpack.c.b16 %v751, %v750
    %v757 = vsel %vm65, %v733, 0
    %759 = vmatpush.bf16.msra.mxu0 0
    %760 = vmatpush.bf16.msra.mxu0 0
    %761 = vmatpush.bf16.msra.mxu0 0
    %762 = vmatpush.bf16.msra.mxu0 0
    %763 = vmatpush.bf16.msra.mxu0 0
    %764 = vmatpush.bf16.msra.mxu0 0
    %765 = vmatpush.bf16.msra.mxu0 %v753
    %766 = vmatpush.bf16.msra.mxu0 %v752
    %767 = vmatmul.bf16.gmra.mxu0 %v757
    %v768 = vpop.f32.mrf.mxu0
    %v769 = vadd.f32 %v742, %v768
    %v770 = vpop.f32.mrf.mxu0
    %v771 = vadd.f32 %v742, %v770
    %772 = vdwg.mxu0
    %v773 = vpack.c.bf16 %v771, %v769
    %775 = vrot.lane.b32.xlu0 %v773, 96
    %v776 = vpop.permute.xlu0 %775
    %v778 = vsel %vm171, %v773, 0
    %v781 = vsel %vm171, %v776, 0
    %783 = vmatpush.bf16.xpose.msra.mxu0 0
    %784 = vmatpush.bf16.xpose.msra.mxu0 0
    %785 = vmatpush.bf16.xpose.msra.mxu0 0
    %786 = vmatpush.bf16.xpose.msra.mxu0 0
    %787 = vmatpush.bf16.xpose.msra.mxu0 0
    %788 = vmatpush.bf16.xpose.msra.mxu0 0
    %789 = vmatpush.bf16.xpose.msra.mxu0 0
    %790 = vmatpush.bf16.xpose.msra.mxu0 %v781
    %791 = vmatmul.bf16.gmra.mxu0 %v778
    %v792 = vpop.f32.mrf.mxu0
    %v793 = vadd.f32 %v127, %v792
    %v794 = vpop.f32.mrf.mxu0
    %v795 = vadd.f32 %v128, %v794
    %796 = vdwg.mxu0
    %v797 = vsel %vm192, %v793, -inf
    %798 = vmax.xlane.f32.xlu0 %v797
    %v799 = vpop.xlane.xlu0 %798
    %v800 = vsel %vm192, %v795, -inf
    %801 = vmax.xlane.f32.xlu0 %v800
    %v802 = vpop.xlane.xlu0 %801
    %v803 = vsub.f32 %v793, %v799
    %v804 = vsub.f32 %v795, %v802
    %v805 = vmul.f32 %v803, 1.442695
    %v806 = vpow.pop %v805
    %v807 = vmul.f32 %v804, 1.442695
    %v808 = vpow.pop %v807
    %v809 = vsel %vm192, %v806, 0.0
    %810 = vadd.xlane.f32.xlu0 %v809
    %v811 = vpop.xlane.xlu0 %810
    %v812 = vsel %vm192, %v808, 0.0
    %813 = vadd.xlane.f32.xlu0 %v812
    %v814 = vpop.xlane.xlu0 %813
    %v815 = vrcp.pop %v811
    %v816 = vrcp.pop %v814
    %v817 = vmul.f32 %v806, %v815
    %v818 = vmul.f32 %v808, %v816
    %v819 = vpack.c.bf16 %v818, %v817
    %820 = vrot.lane.b32.xlu0 %v773, 64
    %v821 = vpop.permute.xlu0 %820
    %v824 = vsel %vm192, %v819, 0
    %826 = vmatpush.bf16.msra.mxu0 0
    %827 = vmatpush.bf16.msra.mxu0 0
    %828 = vmatpush.bf16.msra.mxu0 0
    %829 = vmatpush.bf16.msra.mxu0 0
    %830 = vmatpush.bf16.msra.mxu0 0
    %831 = vmatpush.bf16.msra.mxu0 0
    %832 = vmatpush.bf16.msra.mxu0 0
    %833 = vmatpush.bf16.msra.mxu0 %v821
    %834 = vmatmul.bf16.gmra.mxu0 %v824
    %v835 = vpop.f32.mrf.mxu0
    %v836 = vadd.f32 0.0, %v835
    %v837 = vpop.f32.mrf.mxu0
    %v838 = vadd.f32 0.0, %v837
    %839 = vdwg.mxu0
    %840 = vrot.lane.b32.xlu0 %v773, 120
    %v841 = vpop.permute.xlu0 %840
    %842 = vrot.lane.b32.xlu0 %v773, 88
    %v843 = vpop.permute.xlu0 %842
    %v845 = vsel %vm171, %v841, 0
    %v848 = vsel %vm171, %v843, 0
    %850 = vmatpush.bf16.xpose.msra.mxu0 0
    %851 = vmatpush.bf16.xpose.msra.mxu0 0
    %852 = vmatpush.bf16.xpose.msra.mxu0 0
    %853 = vmatpush.bf16.xpose.msra.mxu0 0
    %854 = vmatpush.bf16.xpose.msra.mxu0 0
    %855 = vmatpush.bf16.xpose.msra.mxu0 0
    %856 = vmatpush.bf16.xpose.msra.mxu0 0
    %857 = vmatpush.bf16.xpose.msra.mxu0 %v848
    %858 = vmatmul.bf16.gmra.mxu0 %v845
    %v859 = vpop.f32.mrf.mxu0
    %v860 = vadd.f32 %v127, %v859
    %v861 = vpop.f32.mrf.mxu0
    %v862 = vadd.f32 %v128, %v861
    %863 = vdwg.mxu0
    %v864 = vsel %vm192, %v860, -inf
    %865 = vmax.xlane.f32.xlu0 %v864
    %v866 = vpop.xlane.xlu0 %865
    %v867 = vsel %vm192, %v862, -inf
    %868 = vmax.xlane.f32.xlu0 %v867
    %v869 = vpop.xlane.xlu0 %868
    %v870 = vsub.f32 %v860, %v866
    %v871 = vsub.f32 %v862, %v869
    %v872 = vmul.f32 %v870, 1.442695
    %v873 = vpow.pop %v872
    %v874 = vmul.f32 %v871, 1.442695
    %v875 = vpow.pop %v874
    %v876 = vsel %vm192, %v873, 0.0
    %877 = vadd.xlane.f32.xlu0 %v876
    %v878 = vpop.xlane.xlu0 %877
    %v879 = vsel %vm192, %v875, 0.0
    %880 = vadd.xlane.f32.xlu0 %v879
    %v881 = vpop.xlane.xlu0 %880
    %v882 = vrcp.pop %v878
    %v883 = vrcp.pop %v881
    %v884 = vmul.f32 %v873, %v882
    %v885 = vmul.f32 %v875, %v883
    %v886 = vpack.c.bf16 %v885, %v884
    %887 = vrot.lane.b32.xlu0 %v773, 56
    %v888 = vpop.permute.xlu0 %887
    %v891 = vsel %vm192, %v886, 0
    %893 = vmatpush.bf16.msra.mxu0 0
    %894 = vmatpush.bf16.msra.mxu0 0
    %895 = vmatpush.bf16.msra.mxu0 0
    %896 = vmatpush.bf16.msra.mxu0 0
    %897 = vmatpush.bf16.msra.mxu0 0
    %898 = vmatpush.bf16.msra.mxu0 0
    %899 = vmatpush.bf16.msra.mxu0 0
    %900 = vmatpush.bf16.msra.mxu0 %v888
    %901 = vmatmul.bf16.gmra.mxu0 %v891
    %v902 = vpop.f32.mrf.mxu0
    %v903 = vadd.f32 0.0, %v902
    %v904 = vpop.f32.mrf.mxu0
    %v905 = vadd.f32 0.0, %v904
    %906 = vdwg.mxu0
    %907 = vrot.lane.b32.xlu0 %v773, 112
    %v908 = vpop.permute.xlu0 %907
    %909 = vrot.lane.b32.xlu0 %v773, 80
    %v910 = vpop.permute.xlu0 %909
    %v912 = vsel %vm171, %v908, 0
    %v915 = vsel %vm171, %v910, 0
    %917 = vmatpush.bf16.xpose.msra.mxu0 0
    %918 = vmatpush.bf16.xpose.msra.mxu0 0
    %919 = vmatpush.bf16.xpose.msra.mxu0 0
    %920 = vmatpush.bf16.xpose.msra.mxu0 0
    %921 = vmatpush.bf16.xpose.msra.mxu0 0
    %922 = vmatpush.bf16.xpose.msra.mxu0 0
    %923 = vmatpush.bf16.xpose.msra.mxu0 0
    %924 = vmatpush.bf16.xpose.msra.mxu0 %v915
    %925 = vmatmul.bf16.gmra.mxu0 %v912
    %v926 = vpop.f32.mrf.mxu0
    %v927 = vadd.f32 %v127, %v926
    %v928 = vpop.f32.mrf.mxu0
    %v929 = vadd.f32 %v128, %v928
    %930 = vdwg.mxu0
    %v931 = vsel %vm192, %v927, -inf
    %932 = vmax.xlane.f32.xlu0 %v931
    %v933 = vpop.xlane.xlu0 %932
    %v934 = vsel %vm192, %v929, -inf
    %935 = vmax.xlane.f32.xlu0 %v934
    %v936 = vpop.xlane.xlu0 %935
    %v937 = vsub.f32 %v927, %v933
    %v938 = vsub.f32 %v929, %v936
    %v939 = vmul.f32 %v937, 1.442695
    %v940 = vpow.pop %v939
    %v941 = vmul.f32 %v938, 1.442695
    %v942 = vpow.pop %v941
    %v943 = vsel %vm192, %v940, 0.0
    %944 = vadd.xlane.f32.xlu0 %v943
    %v945 = vpop.xlane.xlu0 %944
    %v946 = vsel %vm192, %v942, 0.0
    %947 = vadd.xlane.f32.xlu0 %v946
    %v948 = vpop.xlane.xlu0 %947
    %v949 = vrcp.pop %v945
    %v950 = vrcp.pop %v948
    %v951 = vmul.f32 %v940, %v949
    %v952 = vmul.f32 %v942, %v950
    %v953 = vpack.c.bf16 %v952, %v951
    %954 = vrot.lane.b32.xlu0 %v773, 48
    %v955 = vpop.permute.xlu0 %954
    %v958 = vsel %vm192, %v953, 0
    %960 = vmatpush.bf16.msra.mxu0 0
    %961 = vmatpush.bf16.msra.mxu0 0
    %962 = vmatpush.bf16.msra.mxu0 0
    %963 = vmatpush.bf16.msra.mxu0 0
    %964 = vmatpush.bf16.msra.mxu0 0
    %965 = vmatpush.bf16.msra.mxu0 0
    %966 = vmatpush.bf16.msra.mxu0 0
    %967 = vmatpush.bf16.msra.mxu0 %v955
    %968 = vmatmul.bf16.gmra.mxu0 %v958
    %v969 = vpop.f32.mrf.mxu0
    %v970 = vadd.f32 0.0, %v969
    %v971 = vpop.f32.mrf.mxu0
    %v972 = vadd.f32 0.0, %v971
    %973 = vdwg.mxu0
    %974 = vrot.lane.b32.xlu0 %v773, 104
    %v975 = vpop.permute.xlu0 %974
    %976 = vrot.lane.b32.xlu0 %v773, 72
    %v977 = vpop.permute.xlu0 %976
    %v979 = vsel %vm171, %v975, 0
    %v982 = vsel %vm171, %v977, 0
    %984 = vmatpush.bf16.xpose.msra.mxu0 0
    %985 = vmatpush.bf16.xpose.msra.mxu0 0
    %986 = vmatpush.bf16.xpose.msra.mxu0 0
    %987 = vmatpush.bf16.xpose.msra.mxu0 0
    %988 = vmatpush.bf16.xpose.msra.mxu0 0
    %989 = vmatpush.bf16.xpose.msra.mxu0 0
    %990 = vmatpush.bf16.xpose.msra.mxu0 0
    %991 = vmatpush.bf16.xpose.msra.mxu0 %v982
    %992 = vmatmul.bf16.gmra.mxu0 %v979
    %v993 = vpop.f32.mrf.mxu0
    %v994 = vadd.f32 %v127, %v993
    %v995 = vpop.f32.mrf.mxu0
    %v996 = vadd.f32 %v128, %v995
    %997 = vdwg.mxu0
    %v998 = vsel %vm192, %v994, -inf
    %999 = vmax.xlane.f32.xlu0 %v998
    %v1000 = vpop.xlane.xlu0 %999
    %v1001 = vsel %vm192, %v996, -inf
    %1002 = vmax.xlane.f32.xlu0 %v1001
    %v1003 = vpop.xlane.xlu0 %1002
    %v1004 = vsub.f32 %v994, %v1000
    %v1005 = vsub.f32 %v996, %v1003
    %v1006 = vmul.f32 %v1004, 1.442695
    %v1007 = vpow.pop %v1006
    %v1008 = vmul.f32 %v1005, 1.442695
    %v1009 = vpow.pop %v1008
    %v1010 = vsel %vm192, %v1007, 0.0
    %1011 = vadd.xlane.f32.xlu0 %v1010
    %v1012 = vpop.xlane.xlu0 %1011
    %v1013 = vsel %vm192, %v1009, 0.0
    %1014 = vadd.xlane.f32.xlu0 %v1013
    %v1015 = vpop.xlane.xlu0 %1014
    %v1016 = vrcp.pop %v1012
    %v1017 = vrcp.pop %v1015
    %v1018 = vmul.f32 %v1007, %v1016
    %v1019 = vmul.f32 %v1009, %v1017
    %v1020 = vpack.c.bf16 %v1019, %v1018
    %1021 = vrot.lane.b32.xlu0 %v773, 40
    %v1022 = vpop.permute.xlu0 %1021
    %v1025 = vsel %vm192, %v1020, 0
    %1027 = vmatpush.bf16.msra.mxu0 0
    %1028 = vmatpush.bf16.msra.mxu0 0
    %1029 = vmatpush.bf16.msra.mxu0 0
    %1030 = vmatpush.bf16.msra.mxu0 0
    %1031 = vmatpush.bf16.msra.mxu0 0
    %1032 = vmatpush.bf16.msra.mxu0 0
    %1033 = vmatpush.bf16.msra.mxu0 0
    %1034 = vmatpush.bf16.msra.mxu0 %v1022
    %1035 = vmatmul.bf16.gmra.mxu0 %v1025
    %v1036 = vpop.f32.mrf.mxu0
    %v1037 = vadd.f32 0.0, %v1036
    %v1038 = vpop.f32.mrf.mxu0
    %v1039 = vadd.f32 0.0, %v1038
    %1040 = vdwg.mxu0
    %1043 = vrot.lane.b32.xlu0 %v903, 8
    %v1044 = vpop.permute.xlu0 %1043
    %1045 = vrot.lane.b32.xlu0 %v905, 8
    %v1046 = vpop.permute.xlu0 %1045
    %1051 = vrot.lane.b32.xlu0 %v970, 16
    %v1052 = vpop.permute.xlu0 %1051
    %1053 = vrot.lane.b32.xlu0 %v972, 16
    %v1054 = vpop.permute.xlu0 %1053
    %1059 = vrot.lane.b32.xlu0 %v1037, 24
    %v1060 = vpop.permute.xlu0 %1059
    %1061 = vrot.lane.b32.xlu0 %v1039, 24
    %v1062 = vpop.permute.xlu0 %1061
    %v1065 = vsel %vm171, %v836, %v1044
    %v1066 = vsel %vm171, %v838, %v1046
    %v1067 = vsel %vm192, %v1065, %v1052
    %v1068 = vsel %vm192, %v1066, %v1054
    %v1069 = vsel %vm465, %v1067, %v1060
    %v1070 = vsel %vm465, %v1068, %v1062
    %v1071 = vpack.c.bf16 %v1070, %v1069
    %s1072 = scalar_lea.vmem %s6, 16
    %v1073 = vld [vmem:[%s1072] sm:$0xf]
    %v1074 = vld [vmem:[%s1072 + $0x4] sm:$0xf]
    %v1075 = vld [vmem:[%s1072 + $0x8] sm:$0xf]
    %v1076 = vld [vmem:[%s1072 + $0xc] sm:$0xf]
    %s1077 = scalar_lea.vmem %s7, 1
    %v1078 = vld [vmem:[%s1077] sm:$0x1]
    %v1080 = vperm.slane %v1078, 0
    %v1086 = vunpack.c.l.b16 %v1073
    %v1087 = vunpack.c.l.b16 %v1074
    %v1088 = vunpack.c.l.b16 %v1075
    %v1089 = vunpack.c.l.b16 %v1076
    %v1090 = vpack.c.b16 %v1087, %v1086
    %v1091 = vpack.c.b16 %v1089, %v1088
    %v1095 = vsel %vm65, %v1071, 0
    %1097 = vmatpush.bf16.msra.mxu0 0
    %1098 = vmatpush.bf16.msra.mxu0 0
    %1099 = vmatpush.bf16.msra.mxu0 0
    %1100 = vmatpush.bf16.msra.mxu0 0
    %1101 = vmatpush.bf16.msra.mxu0 0
    %1102 = vmatpush.bf16.msra.mxu0 0
    %1103 = vmatpush.bf16.msra.mxu0 %v1091
    %1104 = vmatpush.bf16.msra.mxu0 %v1090
    %1105 = vmatmul.bf16.gmra.mxu0 %v1095
    %v1106 = vpop.f32.mrf.mxu0
    %v1107 = vadd.f32 %v1080, %v1106
    %v1108 = vpop.f32.mrf.mxu0
    %v1109 = vadd.f32 %v1080, %v1108
    %1110 = vdwg.mxu0
    %v1111 = vadd.f32 %v731, %v1107
    %v1112 = vadd.f32 %v732, %v1109
    %s1113 = scalar_lea.vmem %s8, 1
    %v1114 = vld [vmem:[%s1113] sm:$0x1]
    %s1115 = scalar_lea.vmem %s9, 1
    %v1116 = vld [vmem:[%s1115] sm:$0x1]
    %v1117 = vsel %vm65, %v1111, 0.0
    %1118 = vadd.xlane.f32.xlu0 %v1117
    %v1119 = vpop.xlane.xlu0 %1118
    %v1120 = vsel %vm65, %v1112, 0.0
    %1121 = vadd.xlane.f32.xlu0 %v1120
    %v1122 = vpop.xlane.xlu0 %1121
    %v1123 = vmul.f32 %v1119, %v78
    %v1124 = vmul.f32 %v1122, %v78
    %v1125 = vsub.f32 %v1111, %v1123
    %v1126 = vsub.f32 %v1112, %v1124
    %v1127 = vmul.f32 %v1125, %v1125
    %v1128 = vmul.f32 %v1126, %v1126
    %v1129 = vsel %vm65, %v1127, 0.0
    %1130 = vadd.xlane.f32.xlu0 %v1129
    %v1131 = vpop.xlane.xlu0 %1130
    %v1132 = vsel %vm65, %v1128, 0.0
    %1133 = vadd.xlane.f32.xlu0 %v1132
    %v1134 = vpop.xlane.xlu0 %1133
    %v1135 = vmul.f32 %v1131, %v78
    %v1136 = vmul.f32 %v1134, %v78
    %v1137 = vadd.f32 %v1135, 1e-12
    %v1138 = vadd.f32 %v1136, 1e-12
    %v1139 = vrsqrt.pop %v1137
    %v1140 = vmul.f32 %v1139, %v1137
    %v1141 = vmul.f32 %v1140, %v1139
    %v1142 = vmul.f32 0.5, %v1141
    %v1143 = vsub.f32 1.5, %v1142
    %v1144 = vmul.f32 %v1139, %v1143
    %vm1145 = vweird.f32 %v1137
    %vm1146 = vweird.f32 %v1139
    %vm1147 = vmor %vm1145, %vm1146
    %v1148 = vsel %vm1147, %v1139, %v1144
    %v1149 = vrsqrt.pop %v1138
    %v1150 = vmul.f32 %v1149, %v1138
    %v1151 = vmul.f32 %v1150, %v1149
    %v1152 = vmul.f32 0.5, %v1151
    %v1153 = vsub.f32 1.5, %v1152
    %v1154 = vmul.f32 %v1149, %v1153
    %vm1155 = vweird.f32 %v1138
    %vm1156 = vweird.f32 %v1149
    %vm1157 = vmor %vm1155, %vm1156
    %v1158 = vsel %vm1157, %v1149, %v1154
    %v1159 = vmul.f32 %v1125, %v1148
    %v1160 = vmul.f32 %v1126, %v1158
    %v1162 = vperm.slane %v1114, 0
    %v1164 = vmul.f32 %v1159, %v1162
    %v1165 = vmul.f32 %v1160, %v1162
    %v1167 = vperm.slane %v1116, 0
    %v1169 = vadd.f32 %v1164, %v1167
    %v1170 = vadd.f32 %v1165, %v1167
    %v1171 = vpack.c.bf16 %v1170, %v1169
    %s1172 = scalar_lea.vmem %s10, 16
    %v1173 = vld [vmem:[%s1172] sm:$0xf]
    %v1174 = vld [vmem:[%s1172 + $0x4] sm:$0xf]
    %v1175 = vld [vmem:[%s1172 + $0x8] sm:$0xf]
    %v1176 = vld [vmem:[%s1172 + $0xc] sm:$0xf]
    %s1177 = scalar_lea.vmem %s11, 1
    %v1178 = vld [vmem:[%s1177] sm:$0x1]
    %v1180 = vperm.slane %v1178, 0
    %v1186 = vunpack.c.l.b16 %v1173
    %v1187 = vunpack.c.l.b16 %v1174
    %v1188 = vunpack.c.l.b16 %v1175
    %v1189 = vunpack.c.l.b16 %v1176
    %v1190 = vpack.c.b16 %v1187, %v1186
    %v1191 = vpack.c.b16 %v1189, %v1188
    %v1195 = vsel %vm65, %v1171, 0
    %1197 = vmatpush.bf16.msra.mxu0 0
    %1198 = vmatpush.bf16.msra.mxu0 0
    %1199 = vmatpush.bf16.msra.mxu0 0
    %1200 = vmatpush.bf16.msra.mxu0 0
    %1201 = vmatpush.bf16.msra.mxu0 0
    %1202 = vmatpush.bf16.msra.mxu0 0
    %1203 = vmatpush.bf16.msra.mxu0 %v1191
    %1204 = vmatpush.bf16.msra.mxu0 %v1190
    %1205 = vmatmul.bf16.gmra.mxu0 %v1195
    %v1206 = vpop.f32.mrf.mxu0
    %v1207 = vadd.f32 %v1180, %v1206
    %v1208 = vpop.f32.mrf.mxu0
    %v1209 = vadd.f32 %v1180, %v1208
    %1210 = vdwg.mxu0
    %v1211 = vmul.f32 %v1207, %v1207
    %v1212 = vmul.f32 %v1209, %v1209
    %v1213 = vmul.f32 %v1207, %v1211
    %v1214 = vmul.f32 %v1209, %v1212
    %v1215 = vmul.f32 %v1213, 0.044715
    %v1216 = vmul.f32 %v1214, 0.044715
    %v1217 = vadd.f32 %v1207, %v1215
    %v1218 = vadd.f32 %v1209, %v1216
    %v1219 = vmul.f32 %v1217, 0.7978846
    %v1220 = vmul.f32 %v1218, 0.7978846
    %v1221 = vtanh.pop %v1219
    %v1222 = vtanh.pop %v1220
    %v1223 = vadd.f32 %v1221, 1.0
    %v1224 = vadd.f32 %v1222, 1.0
    %v1225 = vmul.f32 %v1223, 0.5
    %v1226 = vmul.f32 %v1224, 0.5
    %v1227 = vmul.f32 %v1207, %v1225
    %v1228 = vmul.f32 %v1209, %v1226
    %v1229 = vpack.c.bf16 %v1228, %v1227
    %s1230 = scalar_lea.vmem %s12, 32
    %v1231 = vld [vmem:[%s1230] sm:$0xf]
    %v1232 = vld [vmem:[%s1230 + $0x4] sm:$0xf]
    %v1233 = vld [vmem:[%s1230 + $0x8] sm:$0xf]
    %v1234 = vld [vmem:[%s1230 + $0xc] sm:$0xf]
    %v1235 = vld [vmem:[%s1230 + $0x10] sm:$0xf]
    %v1236 = vld [vmem:[%s1230 + $0x14] sm:$0xf]
    %v1237 = vld [vmem:[%s1230 + $0x18] sm:$0xf]
    %v1238 = vld [vmem:[%s1230 + $0x1c] sm:$0xf]
    %s1239 = scalar_lea.vmem %s13, 1
    %v1240 = vld [vmem:[%s1239] sm:$0x1]
    %v1242 = vperm.slane %v1240, 0
    %v1252 = vunpack.c.l.b16 %v1231
    %v1253 = vunpack.c.l.b16 %v1232
    %v1254 = vunpack.c.l.b16 %v1233
    %v1255 = vunpack.c.l.b16 %v1234
    %v1256 = vunpack.c.l.b16 %v1235
    %v1257 = vunpack.c.l.b16 %v1236
    %v1258 = vunpack.c.l.b16 %v1237
    %v1259 = vunpack.c.l.b16 %v1238
    %v1260 = vpack.c.b16 %v1253, %v1252
    %v1261 = vpack.c.b16 %v1255, %v1254
    %v1262 = vpack.c.b16 %v1257, %v1256
    %v1263 = vpack.c.b16 %v1259, %v1258
    %v1269 = vsel %vm657, %v1229, 0
    %1271 = vmatpush.bf16.msra.mxu0 0
    %1272 = vmatpush.bf16.msra.mxu0 0
    %1273 = vmatpush.bf16.msra.mxu0 0
    %1274 = vmatpush.bf16.msra.mxu0 0
    %1275 = vmatpush.bf16.msra.mxu0 %v1263
    %1276 = vmatpush.bf16.msra.mxu0 %v1262
    %1277 = vmatpush.bf16.msra.mxu0 %v1261
    %1278 = vmatpush.bf16.msra.mxu0 %v1260
    %1279 = vmatmul.bf16.gmra.mxu0 %v1269
    %v1280 = vpop.f32.mrf.mxu0
    %v1281 = vadd.f32 %v1242, %v1280
    %v1282 = vpop.f32.mrf.mxu0
    %v1283 = vadd.f32 %v1242, %v1282
    %1284 = vdwg.mxu0
    %v1285 = vadd.f32 %v1169, %v1281
    %v1286 = vadd.f32 %v1170, %v1283
    %s1287 = scalar_lea.vmem %s14, 1
    %v1288 = vld [vmem:[%s1287] sm:$0x1]
    %s1289 = scalar_lea.vmem %s15, 1
    %v1290 = vld [vmem:[%s1289] sm:$0x1]
    %v1291 = vsel %vm65, %v1285, 0.0
    %1292 = vadd.xlane.f32.xlu0 %v1291
    %v1293 = vpop.xlane.xlu0 %1292
    %v1294 = vsel %vm65, %v1286, 0.0
    %1295 = vadd.xlane.f32.xlu0 %v1294
    %v1296 = vpop.xlane.xlu0 %1295
    %v1297 = vmul.f32 %v1293, %v78
    %v1298 = vmul.f32 %v1296, %v78
    %v1299 = vsub.f32 %v1285, %v1297
    %v1300 = vsub.f32 %v1286, %v1298
    %v1301 = vmul.f32 %v1299, %v1299
    %v1302 = vmul.f32 %v1300, %v1300
    %v1303 = vsel %vm65, %v1301, 0.0
    %1304 = vadd.xlane.f32.xlu0 %v1303
    %v1305 = vpop.xlane.xlu0 %1304
    %v1306 = vsel %vm65, %v1302, 0.0
    %1307 = vadd.xlane.f32.xlu0 %v1306
    %v1308 = vpop.xlane.xlu0 %1307
    %v1309 = vmul.f32 %v1305, %v78
    %v1310 = vmul.f32 %v1308, %v78
    %v1311 = vadd.f32 %v1309, 1e-12
    %v1312 = vadd.f32 %v1310, 1e-12
    %v1313 = vrsqrt.pop %v1311
    %v1314 = vmul.f32 %v1313, %v1311
    %v1315 = vmul.f32 %v1314, %v1313
    %v1316 = vmul.f32 0.5, %v1315
    %v1317 = vsub.f32 1.5, %v1316
    %v1318 = vmul.f32 %v1313, %v1317
    %vm1319 = vweird.f32 %v1311
    %vm1320 = vweird.f32 %v1313
    %vm1321 = vmor %vm1319, %vm1320
    %v1322 = vsel %vm1321, %v1313, %v1318
    %v1323 = vrsqrt.pop %v1312
    %v1324 = vmul.f32 %v1323, %v1312
    %v1325 = vmul.f32 %v1324, %v1323
    %v1326 = vmul.f32 0.5, %v1325
    %v1327 = vsub.f32 1.5, %v1326
    %v1328 = vmul.f32 %v1323, %v1327
    %vm1329 = vweird.f32 %v1312
    %vm1330 = vweird.f32 %v1323
    %vm1331 = vmor %vm1329, %vm1330
    %v1332 = vsel %vm1331, %v1323, %v1328
    %v1333 = vmul.f32 %v1299, %v1322
    %v1334 = vmul.f32 %v1300, %v1332
    %v1336 = vperm.slane %v1288, 0
    %v1338 = vmul.f32 %v1333, %v1336
    %v1339 = vmul.f32 %v1334, %v1336
    %v1341 = vperm.slane %v1290, 0
    %v1343 = vadd.f32 %v1338, %v1341
    %v1344 = vadd.f32 %v1339, %v1341
    %v1346 = vrot.slane %v1344, 7
    %vm1348 = vcmask 1040384
    %v1349 = vsel %vm1348, %v1343, %v1346
    %v1350 = vld [vmem:[%s16] sm:$0xff]
    %v1351 = vld [vmem:[%s16 + $0x8] sm:$0xff]
    %v1352 = vld [vmem:[%s16 + $0x10] sm:$0xff]
    %v1353 = vld [vmem:[%s16 + $0x18] sm:$0xff]
    %v1354 = vld [vmem:[%s17] sm:$0x1]
    %v1356 = vperm.slane %v1354, 0
    %v1359 = vsel %vm65, %v1349, 0
    %1361 = vmatpush.msra.mxu0 0.0
    %1362 = vmatpush.msra.mxu0 0.0
    %1363 = vmatpush.msra.mxu0 0.0
    %1364 = vmatpush.msra.mxu0 0.0
    %1365 = vmatpush.msra.mxu0 0.0
    %1366 = vmatpush.msra.mxu0 0.0
    %1367 = vmatpush.msra.mxu0 0.0
    %1368 = vmatpush.msra.mxu0 0.0
    %1369 = vmatpush.msra.mxu0 0.0
    %1370 = vmatpush.msra.mxu0 0.0
    %1371 = vmatpush.msra.mxu0 0.0
    %1372 = vmatpush.msra.mxu0 0.0
    %1373 = vmatpush.msra.mxu0 %v1353
    %1374 = vmatpush.msra.mxu0 %v1352
    %1375 = vmatpush.msra.mxu0 %v1351
    %1376 = vmatpush.msra.mxu0 %v1350
    %1377 = vmatmul.f32.gmra.mxu0 %v1359
    %v1378 = vpop.f32.mrf.mxu0
    %v1379 = vadd.f32 %v1356, %v1378
    %1380 = vdwg.mxu0
    %1381 = vst [vmem:[#allocation2] sm:$0x3] %v1379
    // Predicated region
    $region74: #{class_model_forward.1} parent=1 // pred_check
      _
    $region75: #{class_model_forward.1} parent=1 // pred_check_branch
      %1383 = sbr.rel (0) target = $region77
    $region76: #{class_model_forward.1} parent=1 // pred_region
      %1385 = vsyncadd [#allocation3], 0
      %s1387 = sshll.u32 [#allocation2], 4
      %s1388 = int_to_ptr.vmem [resolvable:$true] %s1387
      %s1389 = sshll.u32 %s18, 4
      %s1390 = int_to_ptr.hbm [resolvable:$true] %s1389
      %1392 = dma.vmem_to_hbm [thread:$0]  %s1388, 32, %s1390, [#allocation3]
    $region77: #{class_model_forward.1} parent=1 // pred_fallthru
      _
    // Predicated region
    $region78: #{class_model_forward.1} parent=1 // pred_check
      _
    $region79: #{class_model_forward.1} parent=1 // pred_check_branch
      %1394 = sbr.rel (0) target = $region81
    $region80: #{class_model_forward.1} parent=1 // pred_region
      %1396 = dma.done [#allocation3], 32
    $region81: #{class_model_forward.1} parent=1 // pred_fallthru
      _
    %1397 = vsyncpa [#allocation3], 1

</llo_original>
